<compile_context>
chip_gen: v6e
topology: v6e:2x2x1
jax: 0.10.0
libtpu: 0.0.40
codegen_flags: <defaults>
</compile_context>

<pallas_src>
import jax
import jax.numpy as jnp
from jax.experimental import pallas as pl
from jax.experimental.pallas import tpu as pltpu

EPS = 1e-5  # nn.InstanceNorm3d default eps (affine=False, no running stats)


def _round_up(x, m):
    return (x + m - 1) // m * m


# ----------------------------- Pallas kernels -------------------------------
# One batch instance per grid step:
#   p_ref : (1, KC, S)        bf16  im2col patches, fused tap*channel axis KC
#   w_ref : (Cout or 2*Cout, KC) bf16 conv weights in the same fused layout
#   r_ref : (1, Cout, S)      f32   residual added after the norm
#   h_ref : (1, Cout, S)      bf16  intermediate main-path output
#   o_ref : (1, Cout, S)      f32   final output
# InstanceNorm statistics reduce over the lane axis (spatial S) of the
# VMEM-resident f32 accumulator (biased variance + eps, like InstanceNorm3d).


def _instnorm(acc):
    mean = jnp.mean(acc, axis=-1, keepdims=True)
    cen = acc - mean
    var = jnp.mean(cen * cen, axis=-1, keepdims=True)
    return cen * jax.lax.rsqrt(var + EPS)


def _conv1_shortcut_kernel(p_ref, w_ref, h_ref, r_ref):
    # w_ref rows [:Cout]  = 3x3 main conv weights (fused tap*Cin columns)
    # w_ref rows [Cout:]  = 1x1 shortcut weights embedded at the center tap
    acc = jnp.dot(w_ref[...], p_ref[0], preferred_element_type=jnp.float32)
    y = _instnorm(acc)                       # (2*Cout, S) f32
    cout = h_ref.shape[1]
    h_ref[0] = jnp.maximum(y[:cout], 0.0).astype(h_ref.dtype)   # main: IN+ReLU
    r_ref[0] = y[cout:].astype(r_ref.dtype)                     # shortcut: IN


def _conv1_kernel(p_ref, w_ref, h_ref):
    y = _instnorm(jnp.dot(w_ref[...], p_ref[0],
                          preferred_element_type=jnp.float32))
    h_ref[0] = jnp.maximum(y, 0.0).astype(h_ref.dtype)


def _conv2_add_relu_kernel(p_ref, w_ref, r_ref, o_ref):
    y = _instnorm(jnp.dot(w_ref[...], p_ref[0],
                          preferred_element_type=jnp.float32))
    y = y + r_ref[0].astype(jnp.float32)
    o_ref[0] = jnp.maximum(y, 0.0).astype(o_ref.dtype)


# ----------------------------- Pallas wrappers --------------------------------

_PARALLEL = pltpu.CompilerParams(dimension_semantics=("parallel",))


def _check_shapes(KC, S, cout):
    assert S % 128 == 0 and KC % 128 == 0 and cout % 8 == 0


def conv1_with_shortcut(patches, w_cat):
    """First conv (IN+ReLU) and 1x1 shortcut conv (IN) from shared patches."""
    N, KC, S = patches.shape
    two_cout, KCw = w_cat.shape
    cout = two_cout // 2
    assert KCw == KC
    _check_shapes(KC, S, cout)
    return pl.pallas_call(
        _conv1_shortcut_kernel,
        out_shape=(jax.ShapeDtypeStruct((N, cout, S), jnp.bfloat16),
                   jax.ShapeDtypeStruct((N, cout, S), jnp.float32)),
        grid=(N,),
        in_specs=[pl.BlockSpec((1, KC, S), lambda n: (n, 0, 0)),
                  pl.BlockSpec((two_cout, KC), lambda n: (0, 0))],
        out_specs=(pl.BlockSpec((1, cout, S), lambda n: (n, 0, 0)),
                   pl.BlockSpec((1, cout, S), lambda n: (n, 0, 0))),
        compiler_params=_PARALLEL,
    )(patches, w_cat)


def conv1_only(patches, w):
    """First conv + InstanceNorm + ReLU (identity-residual blocks)."""
    N, KC, S = patches.shape
    cout, KCw = w.shape
    assert KCw == KC
    _check_shapes(KC, S, cout)
    return pl.pallas_call(
        _conv1_kernel,
        out_shape=jax.ShapeDtypeStruct((N, cout, S), jnp.bfloat16),
        grid=(N,),
        in_specs=[pl.BlockSpec((1, KC, S), lambda n: (n, 0, 0)),
                  pl.BlockSpec((cout, KC), lambda n: (0, 0))],
        out_specs=pl.BlockSpec((1, cout, S), lambda n: (n, 0, 0)),
        compiler_params=_PARALLEL,
    )(patches, w)


def conv2_add_relu(patches, w, residual):
    """Second conv + InstanceNorm + residual add + ReLU (fused epilogue)."""
    N, KC, S = patches.shape
    cout, KCw = w.shape
    assert KCw == KC
    assert residual.shape == (N, cout, S)
    _check_shapes(KC, S, cout)
    return pl.pallas_call(
        _conv2_add_relu_kernel,
        out_shape=jax.ShapeDtypeStruct((N, cout, S), jnp.float32),
        grid=(N,),
        in_specs=[pl.BlockSpec((1, KC, S), lambda n: (n, 0, 0)),
                  pl.BlockSpec((cout, KC), lambda n: (0, 0)),
                  pl.BlockSpec((1, cout, S), lambda n: (n, 0, 0))],
        out_specs=pl.BlockSpec((1, cout, S), lambda n: (n, 0, 0)),
        compiler_params=_PARALLEL,
    )(patches, w, residual)


# ------------------------- im2col glue (plain JAX) ---------------------------

def _im2col_3x3(x, stride, kc_pad):
    """x: (N, C, D, H, W) -> patches (N, kc_pad, S_out) bf16.

    Fused contraction ordering: row index = (kd*9 + kh*3 + kw)*C + ci, i.e.
    w[co, t*C + ci] <-> torch_weight[co, ci, kd, kh, kw].
    Padding (1,1,1) == Conv3dAuto(kernel_size=3): (3//2, 3//2, 3//3) = (1,1,1).
    The center tap t=13 (rows [13*C, 14*C)) equals the stride-s input, which
    is exactly what the 1x1 stride-s shortcut conv consumes.
    """
    N, C, D, H, W = x.shape
    xp = jnp.pad(x, ((0, 0), (0, 0), (1, 1), (1, 1), (1, 1)))
    Do = (D + 2 - 3) // stride + 1
    Ho = (H + 2 - 3) // stride + 1
    Wo = (W + 2 - 3) // stride + 1
    taps = []
    for kd in range(3):
        for kh in range(3):
            for kw in range(3):
                win = xp[:, :,
                         kd:kd + (Do - 1) * stride + 1:stride,
                         kh:kh + (Ho - 1) * stride + 1:stride,
                         kw:kw + (Wo - 1) * stride + 1:stride]
                taps.append(win.reshape(N, C, Do * Ho * Wo))
    patches = jnp.stack(taps, axis=1).reshape(N, 27 * C, -1).astype(jnp.bfloat16)
    patches = jnp.pad(patches, ((0, 0), (0, kc_pad - 27 * C), (0, 0)))
    return patches, (Do, Ho, Wo)


# ------------------------------ model blocks ---------------------------------

def resnet_basic_block(x, p):
    """ResNetBasicBlock forward.  x: (N, Cin, D, H, W) f32 or bf16."""
    N = x.shape[0]
    has_shortcut = p.get("w1s") is not None
    # ResNetLayer: downsampling = 2 iff in_channels != out_channels, which is
    # exactly when the 1x1 shortcut exists (expansion == 1).
    stride = 2 if has_shortcut else 1

    w_first = p["w1s"] if has_shortcut else p["w1"]
    patches1, (Do, Ho, Wo) = _im2col_3x3(x, stride, w_first.shape[1])

    if has_shortcut:
        # conv3x3(stride)+IN+ReLU and conv1x1(stride)+IN share one matmul.
        h, residual = conv1_with_shortcut(patches1, w_first)
        Cout = h.shape[1]
    else:
        h = conv1_only(patches1, w_first)
        Cout = h.shape[1]
        residual = x.reshape(N, Cout, -1).astype(jnp.float32)      # identity

    # conv3x3(stride 1) + InstanceNorm + residual-add + ReLU (fused epilogue)
    patches2, _ = _im2col_3x3(h.reshape(N, Cout, Do, Ho, Wo), 1, p["w2"].shape[1])
    y = conv2_add_relu(patches2, p["w2"], residual)
    return y.reshape(N, Cout, Do, Ho, Wo)


def resnet_layer_forward(params, x):
    """ResNetLayer.forward: sequential ResNetBasicBlocks."""
    for blk in params["blocks"]:
        x = resnet_basic_block(x, blk)
    return x


# ------------------------------ parameter init --------------------------------

def _winit(key, cout, kc, fan_in, kc_pad):
    w = jax.random.normal(key, (cout, kc), jnp.float32) / (float(fan_in) ** 0.5)
    return jnp.pad(w, ((0, 0), (0, kc_pad - kc)))


def init_resnet_layer(key, in_channels, out_channels, n=1):
    blocks = []
    cin = in_channels
    for bkey in jax.random.split(key, n):
        k1, k2, k3 = jax.random.split(bkey, 3)
        kc1 = _round_up(27 * cin, 128)
        kc2 = _round_up(27 * out_channels, 128)
        # w1[co, (kd*9+kh*3+kw)*Cin + ci]  <->  torch w1[co, ci, kd, kh, kw]
        w1 = _winit(k1, out_channels, 27 * cin, 27 * cin, kc1)
        w2 = _winit(k2, out_channels, 27 * out_channels, 27 * out_channels, kc2)
        blk = {"w2": w2.astype(jnp.bfloat16), "w1": None, "w1s": None}
        if cin != out_channels:
            # 1x1 shortcut weights embedded at the center tap (t=13) columns of
            # the fused 3x3 contraction axis, stacked under the main weights.
            ws = jax.random.normal(k3, (out_channels, cin), jnp.float32) / (float(cin) ** 0.5)
            ws_embed = jnp.zeros((out_channels, kc1), jnp.float32)
            ws_embed = ws_embed.at[:, 13 * cin:14 * cin].set(ws)
            blk["w1s"] = jnp.concatenate([w1, ws_embed], axis=0).astype(jnp.bfloat16)
        else:
            blk["w1"] = w1.astype(jnp.bfloat16)
        blocks.append(blk)
        cin = out_channels
    return {"blocks": blocks}


# ---------------------------------- main ---------------------------------------

if __name__ == "__main__":
    IN_CHANNELS, OUT_CHANNELS, N_BLOCKS = 4, 32, 1     # ResNetLayer(4, 32, n=1)
    key = jax.random.PRNGKey(0)
    kx, kp = jax.random.split(key)

    # PyTorch input layout NCDHW: (batch, channels, depth, height, width).
    x = jax.random.normal(kx, (2, IN_CHANNELS, 16, 16, 16), jnp.float32)
    params = init_resnet_layer(kp, IN_CHANNELS, OUT_CHANNELS, n=N_BLOCKS)

    fwd = jax.jit(resnet_layer_forward)
    out = jax.block_until_ready(fwd(params, x))

    # Cin != Cout -> downsampling = 2 -> spatial 16 -> 8
    assert out.shape == (2, OUT_CHANNELS, 8, 8, 8), out.shape
    assert bool(jnp.all(jnp.isfinite(out)))
    assert bool(jnp.all(out >= 0.0))      # final ReLU
    assert bool(jnp.any(out > 0.0))
    print("KERNEL_OK")
</pallas_src>

<mosaic_0001>
module attributes {stable_mosaic.version = 11 : i64} {
  func.func @_conv1_shortcut_kernel(%arg0: i32, %arg1: memref<1x128x512xbf16, #tpu.memory_space<vmem>>, %arg2: memref<64x128xbf16, #tpu.memory_space<vmem>>, %arg3: memref<1x32x512xbf16, #tpu.memory_space<vmem>>, %arg4: memref<1x32x512xf32, #tpu.memory_space<vmem>>) attributes {dimension_semantics = [#tpu.dimension_semantics<parallel>], iteration_bounds = array<i64: 2>, scalar_prefetch = 0 : i64, scratch_operands = 0 : i64, tpu.core_type = #tpu.core_type<tc>, window_params = [{transform_indices = @transform_0, window_bounds = array<i64: 1, 128, 512>}, {pipeline_mode = #tpu.pipeline_mode<synchronous>, transform_indices = @transform_1, window_bounds = array<i64: 64, 128>}, {transform_indices = @transform_2, window_bounds = array<i64: 1, 32, 512>}, {transform_indices = @transform_3, window_bounds = array<i64: 1, 32, 512>}]} {
    %c0 = arith.constant 0 : index
    %c0_0 = arith.constant 0 : index
    %0 = vector.load %arg2[%c0, %c0_0] : memref<64x128xbf16, #tpu.memory_space<vmem>>, vector<64x128xbf16>
    %c0_1 = arith.constant 0 : index
    %c0_2 = arith.constant 0 : index
    %c0_3 = arith.constant 0 : index
    %1 = vector.load %arg1[%c0_1, %c0_2, %c0_3] : memref<1x128x512xbf16, #tpu.memory_space<vmem>>, vector<1x128x512xbf16>
    %2 = vector.shape_cast %1 : vector<1x128x512xbf16> to vector<128x512xbf16>
    %cst = arith.constant dense<0.000000e+00> : vector<64x512xf32>
    %3 = tpu.matmul %0, %2, %cst {dimension_numbers = #tpu.dot_dimension_numbers<[1], [0], [0], [1], [0, 0, 1, 1], [], []>} : vector<64x128xbf16>, vector<128x512xbf16>, vector<64x512xf32> -> vector<64x512xf32>
    %cst_4 = arith.constant dense<0.000000e+00> : vector<64xf32>
    %4 = vector.multi_reduction <add>, %3, %cst_4 [1] : vector<64x512xf32> to vector<64xf32>
    %5 = vector.shape_cast %4 : vector<64xf32> to vector<64x1xf32>
    %cst_5 = arith.constant 5.120000e+02 : f32
    %6 = vector.broadcast %cst_5 : f32 to vector<64x1xf32>
    %7 = arith.divf %5, %6 : vector<64x1xf32>
    %8 = vector.broadcast %7 : vector<64x1xf32> to vector<64x512xf32>
    %9 = arith.subf %3, %8 : vector<64x512xf32>
    %10 = arith.mulf %9, %9 : vector<64x512xf32>
    %cst_6 = arith.constant dense<0.000000e+00> : vector<64xf32>
    %11 = vector.multi_reduction <add>, %10, %cst_6 [1] : vector<64x512xf32> to vector<64xf32>
    %12 = vector.shape_cast %11 : vector<64xf32> to vector<64x1xf32>
    %cst_7 = arith.constant 5.120000e+02 : f32
    %13 = vector.broadcast %cst_7 : f32 to vector<64x1xf32>
    %14 = arith.divf %12, %13 : vector<64x1xf32>
    %cst_8 = arith.constant 9.99999974E-6 : f32
    %15 = vector.broadcast %cst_8 : f32 to vector<64x1xf32>
    %16 = arith.addf %14, %15 : vector<64x1xf32>
    %17 = math.rsqrt %16 : vector<64x1xf32>
    %18 = vector.broadcast %17 : vector<64x1xf32> to vector<64x512xf32>
    %19 = arith.mulf %9, %18 : vector<64x512xf32>
    %20 = vector.extract_strided_slice %19 {offsets = [0, 0], sizes = [32, 512], strides = [1, 1]} : vector<64x512xf32> to vector<32x512xf32>
    %cst_9 = arith.constant 0.000000e+00 : f32
    %21 = vector.broadcast %cst_9 : f32 to vector<32x512xf32>
    %22 = arith.maximumf %20, %21 : vector<32x512xf32>
    %23 = arith.truncf %22 : vector<32x512xf32> to vector<32x512xbf16>
    %c0_10 = arith.constant 0 : index
    %c0_11 = arith.constant 0 : index
    %c0_12 = arith.constant 0 : index
    %24 = vector.load %arg3[%c0_10, %c0_11, %c0_12] : memref<1x32x512xbf16, #tpu.memory_space<vmem>>, vector<1x32x512xbf16>
    %25 = vector.shape_cast %24 : vector<1x32x512xbf16> to vector<32x512xbf16>
    %26 = vector.shape_cast %23 : vector<32x512xbf16> to vector<1x32x512xbf16>
    tpu.vector_store %arg3[%c0_10, %c0_11, %c0_12], %26 {strides = array<i32>} : memref<1x32x512xbf16, #tpu.memory_space<vmem>>, vector<1x32x512xbf16>,
    %27 = vector.extract_strided_slice %19 {offsets = [32, 0], sizes = [32, 512], strides = [1, 1]} : vector<64x512xf32> to vector<32x512xf32>
    %c0_13 = arith.constant 0 : index
    %c0_14 = arith.constant 0 : index
    %c0_15 = arith.constant 0 : index
    %28 = vector.load %arg4[%c0_13, %c0_14, %c0_15] : memref<1x32x512xf32, #tpu.memory_space<vmem>>, vector<1x32x512xf32>
    %29 = vector.shape_cast %28 : vector<1x32x512xf32> to vector<32x512xf32>
    %30 = vector.shape_cast %27 : vector<32x512xf32> to vector<1x32x512xf32>
    tpu.vector_store %arg4[%c0_13, %c0_14, %c0_15], %30 {strides = array<i32>} : memref<1x32x512xf32, #tpu.memory_space<vmem>>, vector<1x32x512xf32>,
    return
  }
  func.func @transform_0(%arg0: i32) -> (i32, i32, i32) {
    %c0_i32 = arith.constant 0 : i32
    %c0_i32_0 = arith.constant 0 : i32
    %c0_i32_1 = arith.constant 0 : i32
    return %arg0, %c0_i32, %c0_i32_0 : i32, i32, i32
  }
  func.func @transform_1(%arg0: i32) -> (i32, i32) {
    %c0_i32 = arith.constant 0 : i32
    %c0_i32_0 = arith.constant 0 : i32
    %c0_i32_1 = arith.constant 0 : i32
    return %c0_i32, %c0_i32_0 : i32, i32
  }
  func.func @transform_2(%arg0: i32) -> (i32, i32, i32) {
    %c0_i32 = arith.constant 0 : i32
    %c0_i32_0 = arith.constant 0 : i32
    %c0_i32_1 = arith.constant 0 : i32
    return %arg0, %c0_i32, %c0_i32_0 : i32, i32, i32
  }
  func.func @transform_3(%arg0: i32) -> (i32, i32, i32) {
    %c0_i32 = arith.constant 0 : i32
    %c0_i32_0 = arith.constant 0 : i32
    %c0_i32_1 = arith.constant 0 : i32
    return %arg0, %c0_i32, %c0_i32_0 : i32, i32, i32
  }
}

module attributes {stable_mosaic.version = 11 : i64} {
  func.func @_conv2_add_relu_kernel(%arg0: i32, %arg1: memref<1x896x512xbf16, #tpu.memory_space<vmem>>, %arg2: memref<32x896xbf16, #tpu.memory_space<vmem>>, %arg3: memref<1x32x512xf32, #tpu.memory_space<vmem>>, %arg4: memref<1x32x512xf32, #tpu.memory_space<vmem>>) attributes {dimension_semantics = [#tpu.dimension_semantics<parallel>], iteration_bounds = array<i64: 2>, scalar_prefetch = 0 : i64, scratch_operands = 0 : i64, tpu.core_type = #tpu.core_type<tc>, window_params = [{transform_indices = @transform_0, window_bounds = array<i64: 1, 896, 512>}, {pipeline_mode = #tpu.pipeline_mode<synchronous>, transform_indices = @transform_1, window_bounds = array<i64: 32, 896>}, {transform_indices = @transform_2, window_bounds = array<i64: 1, 32, 512>}, {transform_indices = @transform_3, window_bounds = array<i64: 1, 32, 512>}]} {
    %c0 = arith.constant 0 : index
    %c0_0 = arith.constant 0 : index
    %0 = vector.load %arg2[%c0, %c0_0] : memref<32x896xbf16, #tpu.memory_space<vmem>>, vector<32x896xbf16>
    %c0_1 = arith.constant 0 : index
    %c0_2 = arith.constant 0 : index
    %c0_3 = arith.constant 0 : index
    %1 = vector.load %arg1[%c0_1, %c0_2, %c0_3] : memref<1x896x512xbf16, #tpu.memory_space<vmem>>, vector<1x896x512xbf16>
    %2 = vector.shape_cast %1 : vector<1x896x512xbf16> to vector<896x512xbf16>
    %cst = arith.constant dense<0.000000e+00> : vector<32x512xf32>
    %3 = tpu.matmul %0, %2, %cst {dimension_numbers = #tpu.dot_dimension_numbers<[1], [0], [0], [1], [0, 0, 1, 1], [], []>} : vector<32x896xbf16>, vector<896x512xbf16>, vector<32x512xf32> -> vector<32x512xf32>
    %cst_4 = arith.constant dense<0.000000e+00> : vector<32xf32>
    %4 = vector.multi_reduction <add>, %3, %cst_4 [1] : vector<32x512xf32> to vector<32xf32>
    %5 = vector.shape_cast %4 : vector<32xf32> to vector<32x1xf32>
    %cst_5 = arith.constant 5.120000e+02 : f32
    %6 = vector.broadcast %cst_5 : f32 to vector<32x1xf32>
    %7 = arith.divf %5, %6 : vector<32x1xf32>
    %8 = vector.broadcast %7 : vector<32x1xf32> to vector<32x512xf32>
    %9 = arith.subf %3, %8 : vector<32x512xf32>
    %10 = arith.mulf %9, %9 : vector<32x512xf32>
    %cst_6 = arith.constant dense<0.000000e+00> : vector<32xf32>
    %11 = vector.multi_reduction <add>, %10, %cst_6 [1] : vector<32x512xf32> to vector<32xf32>
    %12 = vector.shape_cast %11 : vector<32xf32> to vector<32x1xf32>
    %cst_7 = arith.constant 5.120000e+02 : f32
    %13 = vector.broadcast %cst_7 : f32 to vector<32x1xf32>
    %14 = arith.divf %12, %13 : vector<32x1xf32>
    %cst_8 = arith.constant 9.99999974E-6 : f32
    %15 = vector.broadcast %cst_8 : f32 to vector<32x1xf32>
    %16 = arith.addf %14, %15 : vector<32x1xf32>
    %17 = math.rsqrt %16 : vector<32x1xf32>
    %18 = vector.broadcast %17 : vector<32x1xf32> to vector<32x512xf32>
    %19 = arith.mulf %9, %18 : vector<32x512xf32>
    %c0_9 = arith.constant 0 : index
    %c0_10 = arith.constant 0 : index
    %c0_11 = arith.constant 0 : index
    %20 = vector.load %arg3[%c0_9, %c0_10, %c0_11] : memref<1x32x512xf32, #tpu.memory_space<vmem>>, vector<1x32x512xf32>
    %21 = vector.shape_cast %20 : vector<1x32x512xf32> to vector<32x512xf32>
    %22 = arith.addf %19, %21 : vector<32x512xf32>
    %cst_12 = arith.constant 0.000000e+00 : f32
    %23 = vector.broadcast %cst_12 : f32 to vector<32x512xf32>
    %24 = arith.maximumf %22, %23 : vector<32x512xf32>
    %c0_13 = arith.constant 0 : index
    %c0_14 = arith.constant 0 : index
    %c0_15 = arith.constant 0 : index
    %25 = vector.load %arg4[%c0_13, %c0_14, %c0_15] : memref<1x32x512xf32, #tpu.memory_space<vmem>>, vector<1x32x512xf32>
    %26 = vector.shape_cast %25 : vector<1x32x512xf32> to vector<32x512xf32>
    %27 = vector.shape_cast %24 : vector<32x512xf32> to vector<1x32x512xf32>
    tpu.vector_store %arg4[%c0_13, %c0_14, %c0_15], %27 {strides = array<i32>} : memref<1x32x512xf32, #tpu.memory_space<vmem>>, vector<1x32x512xf32>,
    return
  }
  func.func @transform_0(%arg0: i32) -> (i32, i32, i32) {
    %c0_i32 = arith.constant 0 : i32
    %c0_i32_0 = arith.constant 0 : i32
    %c0_i32_1 = arith.constant 0 : i32
    return %arg0, %c0_i32, %c0_i32_0 : i32, i32, i32
  }
  func.func @transform_1(%arg0: i32) -> (i32, i32) {
    %c0_i32 = arith.constant 0 : i32
    %c0_i32_0 = arith.constant 0 : i32
    %c0_i32_1 = arith.constant 0 : i32
    return %c0_i32, %c0_i32_0 : i32, i32
  }
  func.func @transform_2(%arg0: i32) -> (i32, i32, i32) {
    %c0_i32 = arith.constant 0 : i32
    %c0_i32_0 = arith.constant 0 : i32
    %c0_i32_1 = arith.constant 0 : i32
    return %arg0, %c0_i32, %c0_i32_0 : i32, i32, i32
  }
  func.func @transform_3(%arg0: i32) -> (i32, i32, i32) {
    %c0_i32 = arith.constant 0 : i32
    %c0_i32_0 = arith.constant 0 : i32
    %c0_i32_1 = arith.constant 0 : i32
    return %arg0, %c0_i32, %c0_i32_0 : i32, i32, i32
  }
}

</mosaic_0001>

<llo_original>
// kernel: resnet_layer_forward.2
$region0: #{resnet_layer_forward.2}
  #allocation0 [shape = 'u32[]', space=smem, size = 0x4, offset = 0x4, fixed_abs, tag = 'smem constant byte address 0x4 - core index']
  #allocation1 [shape = 'u32[144,128]{1,0:T(1,128)}', space=vmem, size = 0x12000, scoped, tag = 'internal scratch']
  %s0 = inlined_call_operand.vmem [shape: bf16[2,128,512], index: 0, kind: input, shape index: {}]
  %s1 = inlined_call_operand.vmem [shape: bf16[64,128], index: 1, kind: input, shape index: {}]
  %s2 = inlined_call_operand.vmem [shape: bf16[2,32,512], index: 2, kind: output, shape index: {0}]
  %s3 = inlined_call_operand.vmem [shape: f32[2,32,512], index: 3, kind: output, shape index: {1}]
  %4 = xla_tuple %s2, %s3
  %s5 = sld [smem:[#allocation0]]
  $region49: #{resnet_layer_forward.2} parent=0
    _
  %s7 = ssub.s32 1, %s5
  %s8 = scalar_select 0, %s7, %s5
  loop: start=0, step=1, limit=4
  $region2: #{resnet_layer_forward.2} parent=0 // loop_pre_header
    _
  $region3: #{resnet_layer_forward.2} parent=0 // loop_header
    %s10 = sphi 0, %s14
    %p11 = scmp.ge.s32.totalorder %s10, 4
    %s20 = sphi 0, %s22
    %s23 = sphi 0, %s20
    %s24 = sphi 0, %s23
    %s40 = sphi 0, %s24
    %s44 = sphi 0, %s44
    %s46 = sphi 0, %s44
    %s47 = sphi 0, %s46
    %s61 = sphi 0, %s47
    %s67 = sphi 0, %s69
    %s70 = sphi 0, %s67
    %s71 = sphi 0, %s70
    %s87 = sphi 0, %s71
    %s93 = sphi 0, %s95
    %s96 = sphi 0, %s93
    %s97 = sphi 0, %s96
    %s113 = sphi 0, %s97
  $region4: #{resnet_layer_forward.2} parent=0 // loop_header_branch
    %13 = sbr.rel (%p11) target = $region8
  $region5: #{resnet_layer_forward.2} parent=0 // loop_body
    %s15 = ssub.s32 %s10, 1
    %s16 = ssub.s32 %s10, 2
    %s17 = sadd.s32 %s10, 1
    %s18 = ssub.s32 %s10, %s17
    %p19 = scmp.eq.s32.totalorder %s18, 0
    %s21 = sadd.s32 %s20, 1
    %s22 = scalar_select %p19, %s20, %s21
    %p25 = pneg %p19
    %p26 = scmp.eq.s32.totalorder %s10, 1
    %p27 = por %p25, %p26
    %p28 = scmp.ne.s32.totalorder %s20, %s23
    %p29 = scmp.eq.s32.totalorder %s10, 0
    %p30 = por %p28, %p29
    %p31 = scmp.ne.s32.totalorder %s20, %s23
    %p32 = scmp.eq.s32.totalorder %s15, 1
    %p33 = por %p31, %p32
    %p34 = scmp.ne.s32.totalorder %s23, %s24
    %p35 = scmp.eq.s32.totalorder %s15, 0
    %p36 = por %p34, %p35
    %p37 = scmp.ne.s32.totalorder %s23, %s24
    %p38 = scmp.eq.s32.totalorder %s16, 1
    %p39 = por %p37, %p38
    %p41 = scmp.ne.s32.totalorder %s24, %s40
    %p42 = scmp.eq.s32.totalorder %s16, 0
    %p43 = por %p41, %p42
    %s45 = sadd.s32 %s44, 1
    %p48 = scmp.eq.s32.totalorder %s10, 1
    %p49 = scmp.ne.s32.totalorder %s44, %s46
    %p50 = scmp.eq.s32.totalorder %s10, 0
    %p51 = por %p49, %p50
    %p52 = scmp.ne.s32.totalorder %s44, %s46
    %p53 = scmp.eq.s32.totalorder %s15, 1
    %p54 = por %p52, %p53
    %p55 = scmp.ne.s32.totalorder %s46, %s47
    %p56 = scmp.eq.s32.totalorder %s15, 0
    %p57 = por %p55, %p56
    %p58 = scmp.ne.s32.totalorder %s46, %s47
    %p59 = scmp.eq.s32.totalorder %s16, 1
    %p60 = por %p58, %p59
    %p62 = scmp.ne.s32.totalorder %s47, %s61
    %p63 = scmp.eq.s32.totalorder %s16, 0
    %p64 = por %p62, %p63
    %s65 = ssub.s32 %s10, %s17
    %p66 = scmp.eq.s32.totalorder %s65, 0
    %s68 = sadd.s32 %s67, 1
    %s69 = scalar_select %p66, %s67, %s68
    %p72 = pneg %p66
    %p73 = scmp.eq.s32.totalorder %s10, 1
    %p74 = por %p72, %p73
    %p75 = scmp.ne.s32.totalorder %s67, %s70
    %p76 = scmp.eq.s32.totalorder %s10, 0
    %p77 = por %p75, %p76
    %p78 = scmp.ne.s32.totalorder %s67, %s70
    %p79 = scmp.eq.s32.totalorder %s15, 1
    %p80 = por %p78, %p79
    %p81 = scmp.ne.s32.totalorder %s70, %s71
    %p82 = scmp.eq.s32.totalorder %s15, 0
    %p83 = por %p81, %p82
    %p84 = scmp.ne.s32.totalorder %s70, %s71
    %p85 = scmp.eq.s32.totalorder %s16, 1
    %p86 = por %p84, %p85
    %p88 = scmp.ne.s32.totalorder %s71, %s87
    %p89 = scmp.eq.s32.totalorder %s16, 0
    %p90 = por %p88, %p89
    %s91 = ssub.s32 %s10, %s17
    %p92 = scmp.eq.s32.totalorder %s91, 0
    %s94 = sadd.s32 %s93, 1
    %s95 = scalar_select %p92, %s93, %s94
    %p98 = pneg %p92
    %p99 = scmp.eq.s32.totalorder %s10, 1
    %p100 = por %p98, %p99
    %p101 = scmp.ne.s32.totalorder %s93, %s96
    %p102 = scmp.eq.s32.totalorder %s10, 0
    %p103 = por %p101, %p102
    %p104 = scmp.ne.s32.totalorder %s93, %s96
    %p105 = scmp.eq.s32.totalorder %s15, 1
    %p106 = por %p104, %p105
    %p107 = scmp.ne.s32.totalorder %s96, %s97
    %p108 = scmp.eq.s32.totalorder %s15, 0
    %p109 = por %p107, %p108
    %p110 = scmp.ne.s32.totalorder %s96, %s97
    %p111 = scmp.eq.s32.totalorder %s16, 1
    %p112 = por %p110, %p111
    %p114 = scmp.ne.s32.totalorder %s97, %s113
    %p115 = scmp.eq.s32.totalorder %s16, 0
    %p116 = por %p114, %p115
    %p117 = scmp.le.s32.totalorder 1, %s10
    %p118 = scmp.lt.s32.totalorder %s10, 3
    %p119 = pnand %p117, %p118
    %p120 = pneg %p119
    // Predicated region
    $region9: #{resnet_layer_forward.2} parent=5 // pred_check
      _
    $region10: #{resnet_layer_forward.2} parent=5 // pred_check_branch
      %122 = sbr.rel (%p119) target = $region12
    $region11: #{resnet_layer_forward.2} parent=5 // pred_region
      %s123 = ssub.s32 %s10, 1
      // Predicated region
      $region13: #{resnet_layer_forward.2} parent=11 // pred_check
        %p124 = pneg %p57
      $region14: #{resnet_layer_forward.2} parent=11 // pred_check_branch
        %126 = sbr.rel (%p124) target = $region16
      $region15: #{resnet_layer_forward.2} parent=11 // pred_region
        _
      $region16: #{resnet_layer_forward.2} parent=11 // pred_fallthru
        _
    $region12: #{resnet_layer_forward.2} parent=5 // pred_fallthru
      _
    %p127 = scmp.lt.s32.totalorder %s10, 2
    // Predicated region
    $region17: #{resnet_layer_forward.2} parent=5 // pred_check
      %p128 = pneg %p127
    $region18: #{resnet_layer_forward.2} parent=5 // pred_check_branch
      %130 = sbr.rel (%p128) target = $region20
    $region19: #{resnet_layer_forward.2} parent=5 // pred_region
      // Predicated region
      $region21: #{resnet_layer_forward.2} parent=19 // pred_check
        %p131 = pneg %p30
      $region22: #{resnet_layer_forward.2} parent=19 // pred_check_branch
        %133 = sbr.rel (%p131) target = $region24
      $region23: #{resnet_layer_forward.2} parent=19 // pred_region
        %p134 = scmp.lt.s32.totalorder %s10, 1
        %s135 = scalar_select %p134, %s10, 1
        %s136 = smul.addr %s135, 64
        %s137 = smul.addr %s136, 4
        %s138 = scalar_lea.vmem %s0, %s137
      $region24: #{resnet_layer_forward.2} parent=19 // pred_fallthru
        _
    $region20: #{resnet_layer_forward.2} parent=5 // pred_fallthru
      _
    %p139 = scmp.le.s32.totalorder 1, %s10
    %p140 = scmp.lt.s32.totalorder %s10, 3
    %p141 = pnand %p139, %p140
    %p142 = pneg %p141
    // Predicated region
    $region25: #{resnet_layer_forward.2} parent=5 // pred_check
      _
    $region26: #{resnet_layer_forward.2} parent=5 // pred_check_branch
      %144 = sbr.rel (%p141) target = $region28
    $region27: #{resnet_layer_forward.2} parent=5 // pred_region
      %s145 = ssub.s32 %s10, 1
      %p146 = scmp.lt.s32.totalorder %s15, 1
      %s147 = scalar_select %p146, %s15, 1
      %s148 = smul.addr %s147, 64
      %s149 = smul.addr %s148, 4
      %s150 = scalar_lea.vmem %s0, %s149
      %p151 = pneg %p36
      %p152 = pneg %p33
      %p153 = pneg %p57
      %p154 = pneg %p54
      %p155 = pneg %p83
      %p156 = pneg %p80
      %p157 = scmp.lt.s32.totalorder %s15, 1
      %s158 = scalar_select %p157, %s15, 1
      %s159 = smul.addr %s158, 16
      %s160 = smul.addr %s159, 4
      %s161 = scalar_lea.vmem %s2, %s160
      %p162 = pneg %p109
      %p163 = pneg %p106
      %p164 = scmp.lt.s32.totalorder %s15, 1
      %s165 = scalar_select %p164, %s15, 1
      %s166 = smul.addr %s165, 16
      %s167 = smul.addr %s166, 8
      %s168 = scalar_lea.vmem %s3, %s167
      %p169 = scmp.lt.s32.totalorder %s15, 1
      %s170 = scalar_select %p169, %s15, 1
      %s171 = smul.addr %s170, 64
      %s172 = smul.addr %s171, 4
      %s173 = scalar_lea.vmem %s0, %s172
      %p174 = scmp.lt.s32.totalorder %s15, 1
      %s175 = scalar_select %p174, %s15, 1
      %s176 = smul.addr %s175, 16
      %s177 = smul.addr %s176, 4
      %s178 = scalar_lea.vmem %s2, %s177
      %p179 = scmp.lt.s32.totalorder %s15, 1
      %s180 = scalar_select %p179, %s15, 1
      %s181 = smul.addr %s180, 16
      %s182 = smul.addr %s181, 8
      %s183 = scalar_lea.vmem %s3, %s182
      %v185 = vld [vmem:[%s1] sm:$0xf]
      %v186 = vld [vmem:[%s1 + $0x4] sm:$0xf]
      %v187 = vld [vmem:[%s1 + $0x8] sm:$0xf]
      %v188 = vld [vmem:[%s1 + $0xc] sm:$0xf]
      %v189 = vld [vmem:[%s1 + $0x10] sm:$0xf]
      %v190 = vld [vmem:[%s1 + $0x14] sm:$0xf]
      %v191 = vld [vmem:[%s1 + $0x18] sm:$0xf]
      %v192 = vld [vmem:[%s1 + $0x1c] sm:$0xf]
      %v193 = vld [vmem:[%s173] sm:$0xff]
      %v194 = vld [vmem:[%s173 + $0x8] sm:$0xff]
      %v195 = vld [vmem:[%s173 + $0x10] sm:$0xff]
      %v196 = vld [vmem:[%s173 + $0x18] sm:$0xff]
      %v197 = vld [vmem:[%s173 + $0x20] sm:$0xff]
      %v198 = vld [vmem:[%s173 + $0x28] sm:$0xff]
      %v199 = vld [vmem:[%s173 + $0x30] sm:$0xff]
      %v200 = vld [vmem:[%s173 + $0x38] sm:$0xff]
      %v201 = vld [vmem:[%s173 + $0x40] sm:$0xff]
      %v202 = vld [vmem:[%s173 + $0x48] sm:$0xff]
      %v203 = vld [vmem:[%s173 + $0x50] sm:$0xff]
      %v204 = vld [vmem:[%s173 + $0x58] sm:$0xff]
      %v205 = vld [vmem:[%s173 + $0x60] sm:$0xff]
      %v206 = vld [vmem:[%s173 + $0x68] sm:$0xff]
      %v207 = vld [vmem:[%s173 + $0x70] sm:$0xff]
      %v208 = vld [vmem:[%s173 + $0x78] sm:$0xff]
      %v209 = vld [vmem:[%s173 + $0x80] sm:$0xff]
      %v210 = vld [vmem:[%s173 + $0x88] sm:$0xff]
      %v211 = vld [vmem:[%s173 + $0x90] sm:$0xff]
      %v212 = vld [vmem:[%s173 + $0x98] sm:$0xff]
      %v213 = vld [vmem:[%s173 + $0xa0] sm:$0xff]
      %v214 = vld [vmem:[%s173 + $0xa8] sm:$0xff]
      %v215 = vld [vmem:[%s173 + $0xb0] sm:$0xff]
      %v216 = vld [vmem:[%s173 + $0xb8] sm:$0xff]
      %v217 = vld [vmem:[%s173 + $0xc0] sm:$0xff]
      %v218 = vld [vmem:[%s173 + $0xc8] sm:$0xff]
      %v219 = vld [vmem:[%s173 + $0xd0] sm:$0xff]
      %v220 = vld [vmem:[%s173 + $0xd8] sm:$0xff]
      %v221 = vld [vmem:[%s173 + $0xe0] sm:$0xff]
      %v222 = vld [vmem:[%s173 + $0xe8] sm:$0xff]
      %v223 = vld [vmem:[%s173 + $0xf0] sm:$0xff]
      %v224 = vld [vmem:[%s173 + $0xf8] sm:$0xff]
      %v233 = vunpack.c.l.b16 %v185
      %v234 = vunpack.c.l.b16 %v186
      %v235 = vunpack.c.l.b16 %v187
      %v236 = vunpack.c.l.b16 %v188
      %v237 = vunpack.c.l.b16 %v189
      %v238 = vunpack.c.l.b16 %v190
      %v239 = vunpack.c.l.b16 %v191
      %v240 = vunpack.c.l.b16 %v192
      %v241 = vpack.c.b16 %v234, %v233
      %v242 = vpack.c.b16 %v236, %v235
      %v243 = vpack.c.b16 %v238, %v237
      %v244 = vpack.c.b16 %v240, %v239
      %v281 = vunpack.c.l.b16 %v193
      %v282 = vunpack.c.h.b16 %v193
      %v283 = vunpack.c.l.b16 %v194
      %v284 = vunpack.c.h.b16 %v194
      %v285 = vunpack.c.l.b16 %v195
      %v286 = vunpack.c.h.b16 %v195
      %v287 = vunpack.c.l.b16 %v196
      %v288 = vunpack.c.h.b16 %v196
      %v289 = vunpack.c.l.b16 %v197
      %v290 = vunpack.c.h.b16 %v197
      %v291 = vunpack.c.l.b16 %v198
      %v292 = vunpack.c.h.b16 %v198
      %v293 = vunpack.c.l.b16 %v199
      %v294 = vunpack.c.h.b16 %v199
      %v295 = vunpack.c.l.b16 %v200
      %v296 = vunpack.c.h.b16 %v200
      %v297 = vunpack.c.l.b16 %v201
      %v298 = vunpack.c.h.b16 %v201
      %v299 = vunpack.c.l.b16 %v202
      %v300 = vunpack.c.h.b16 %v202
      %v301 = vunpack.c.l.b16 %v203
      %v302 = vunpack.c.h.b16 %v203
      %v303 = vunpack.c.l.b16 %v204
      %v304 = vunpack.c.h.b16 %v204
      %v305 = vunpack.c.l.b16 %v205
      %v306 = vunpack.c.h.b16 %v205
      %v307 = vunpack.c.l.b16 %v206
      %v308 = vunpack.c.h.b16 %v206
      %v309 = vunpack.c.l.b16 %v207
      %v310 = vunpack.c.h.b16 %v207
      %v311 = vunpack.c.l.b16 %v208
      %v312 = vunpack.c.h.b16 %v208
      %v313 = vunpack.c.l.b16 %v209
      %v314 = vunpack.c.h.b16 %v209
      %v315 = vunpack.c.l.b16 %v210
      %v316 = vunpack.c.h.b16 %v210
      %v317 = vunpack.c.l.b16 %v211
      %v318 = vunpack.c.h.b16 %v211
      %v319 = vunpack.c.l.b16 %v212
      %v320 = vunpack.c.h.b16 %v212
      %v321 = vunpack.c.l.b16 %v213
      %v322 = vunpack.c.h.b16 %v213
      %v323 = vunpack.c.l.b16 %v214
      %v324 = vunpack.c.h.b16 %v214
      %v325 = vunpack.c.l.b16 %v215
      %v326 = vunpack.c.h.b16 %v215
      %v327 = vunpack.c.l.b16 %v216
      %v328 = vunpack.c.h.b16 %v216
      %v329 = vunpack.c.l.b16 %v217
      %v330 = vunpack.c.h.b16 %v217
      %v331 = vunpack.c.l.b16 %v218
      %v332 = vunpack.c.h.b16 %v218
      %v333 = vunpack.c.l.b16 %v219
      %v334 = vunpack.c.h.b16 %v219
      %v335 = vunpack.c.l.b16 %v220
      %v336 = vunpack.c.h.b16 %v220
      %v337 = vunpack.c.l.b16 %v221
      %v338 = vunpack.c.h.b16 %v221
      %v339 = vunpack.c.l.b16 %v222
      %v340 = vunpack.c.h.b16 %v222
      %v341 = vunpack.c.l.b16 %v223
      %v342 = vunpack.c.h.b16 %v223
      %v343 = vunpack.c.l.b16 %v224
      %v344 = vunpack.c.h.b16 %v224
      %v345 = vpack.c.b16 %v285, %v281
      %v346 = vpack.c.b16 %v286, %v282
      %v347 = vpack.c.b16 %v287, %v283
      %v348 = vpack.c.b16 %v288, %v284
      %v349 = vpack.c.b16 %v293, %v289
      %v350 = vpack.c.b16 %v294, %v290
      %v351 = vpack.c.b16 %v295, %v291
      %v352 = vpack.c.b16 %v296, %v292
      %v353 = vpack.c.b16 %v301, %v297
      %v354 = vpack.c.b16 %v302, %v298
      %v355 = vpack.c.b16 %v303, %v299
      %v356 = vpack.c.b16 %v304, %v300
      %v357 = vpack.c.b16 %v309, %v305
      %v358 = vpack.c.b16 %v310, %v306
      %v359 = vpack.c.b16 %v311, %v307
      %v360 = vpack.c.b16 %v312, %v308
      %v361 = vpack.c.b16 %v317, %v313
      %v362 = vpack.c.b16 %v318, %v314
      %v363 = vpack.c.b16 %v319, %v315
      %v364 = vpack.c.b16 %v320, %v316
      %v365 = vpack.c.b16 %v325, %v321
      %v366 = vpack.c.b16 %v326, %v322
      %v367 = vpack.c.b16 %v327, %v323
      %v368 = vpack.c.b16 %v328, %v324
      %v369 = vpack.c.b16 %v333, %v329
      %v370 = vpack.c.b16 %v334, %v330
      %v371 = vpack.c.b16 %v335, %v331
      %v372 = vpack.c.b16 %v336, %v332
      %v373 = vpack.c.b16 %v341, %v337
      %v374 = vpack.c.b16 %v342, %v338
      %v375 = vpack.c.b16 %v343, %v339
      %v376 = vpack.c.b16 %v344, %v340
      %409 = vmatprep.subr.bf16.mxu0 %v374
      %410 = vmatpush1.bf16.msra.mxu0 %v373
      %411 = vmatprep.subr.bf16.mxu0 %v370
      %412 = vmatpush1.bf16.msra.mxu0 %v369
      %413 = vmatprep.subr.bf16.mxu0 %v366
      %414 = vmatpush1.bf16.msra.mxu0 %v365
      %415 = vmatprep.subr.bf16.mxu0 %v362
      %416 = vmatpush1.bf16.msra.mxu0 %v361
      %417 = vmatprep.subr.bf16.mxu0 %v358
      %418 = vmatpush1.bf16.msra.mxu0 %v357
      %419 = vmatprep.subr.bf16.mxu0 %v354
      %420 = vmatpush1.bf16.msra.mxu0 %v353
      %421 = vmatprep.subr.bf16.mxu0 %v350
      %422 = vmatpush1.bf16.msra.mxu0 %v349
      %423 = vmatprep.subr.bf16.mxu0 %v346
      %424 = vmatpush1.bf16.msra.mxu0 %v345
      %425 = vmatprep.subr.bf16.mxu0 0
      %426 = vmatpush2.bf16.msra.mxu0 0
      %427 = vmatprep.subr.bf16.mxu0 0
      %428 = vmatpush2.bf16.msra.mxu0 0
      %429 = vmatprep.subr.bf16.mxu0 0
      %430 = vmatpush2.bf16.msra.mxu0 0
      %431 = vmatprep.subr.bf16.mxu0 0
      %432 = vmatpush2.bf16.msra.mxu0 0
      %433 = vmatprep.subr.bf16.mxu0 0
      %434 = vmatpush2.bf16.msra.mxu0 0
      %435 = vmatprep.subr.bf16.mxu0 0
      %436 = vmatpush2.bf16.msra.mxu0 0
      %437 = vmatprep.subr.bf16.mxu0 0
      %438 = vmatpush2.bf16.msra.mxu0 0
      %439 = vmatprep.subr.bf16.mxu0 0
      %440 = vmatpush2.bf16.msra.mxu0 0
      %441 = vmatprep.mubr.bf16.mxu0 0
      %442 = vmatmul.mubr.bf16.gmra.mxu0 %v241
      %v443 = vpop.f32.mrf.mxu0
      %v444 = vadd.f32 0.0, %v443
      %v445 = vpop.f32.mrf.mxu0
      %v446 = vadd.f32 0.0, %v445
      %v447 = vpop.f32.mrf.mxu0
      %v448 = vadd.f32 0.0, %v447
      %v449 = vpop.f32.mrf.mxu0
      %v450 = vadd.f32 0.0, %v449
      %451 = vmatprep.mubr.bf16.mxu0 0
      %452 = vmatmul.mubr.bf16.gmra.mxu0 %v242
      %v453 = vpop.f32.mrf.mxu0
      %v454 = vadd.f32 0.0, %v453
      %v455 = vpop.f32.mrf.mxu0
      %v456 = vadd.f32 0.0, %v455
      %v457 = vpop.f32.mrf.mxu0
      %v458 = vadd.f32 0.0, %v457
      %v459 = vpop.f32.mrf.mxu0
      %v460 = vadd.f32 0.0, %v459
      %461 = vmatprep.mubr.bf16.mxu0 0
      %462 = vmatmul.mubr.bf16.gmra.mxu0 %v243
      %v463 = vpop.f32.mrf.mxu0
      %v464 = vadd.f32 0.0, %v463
      %v465 = vpop.f32.mrf.mxu0
      %v466 = vadd.f32 0.0, %v465
      %v467 = vpop.f32.mrf.mxu0
      %v468 = vadd.f32 0.0, %v467
      %v469 = vpop.f32.mrf.mxu0
      %v470 = vadd.f32 0.0, %v469
      %471 = vmatprep.mubr.bf16.mxu0 0
      %472 = vmatmul.mubr.bf16.gmra.mxu0 %v244
      %v473 = vpop.f32.mrf.mxu0
      %v474 = vadd.f32 0.0, %v473
      %v475 = vpop.f32.mrf.mxu0
      %v476 = vadd.f32 0.0, %v475
      %v477 = vpop.f32.mrf.mxu0
      %v478 = vadd.f32 0.0, %v477
      %v479 = vpop.f32.mrf.mxu0
      %v480 = vadd.f32 0.0, %v479
      %481 = vdwg.mxu0
      %482 = vmatprep.subr.bf16.mxu0 %v376
      %483 = vmatpush1.bf16.msra.mxu0 %v375
      %484 = vmatprep.subr.bf16.mxu0 %v372
      %485 = vmatpush1.bf16.msra.mxu0 %v371
      %486 = vmatprep.subr.bf16.mxu0 %v368
      %487 = vmatpush1.bf16.msra.mxu0 %v367
      %488 = vmatprep.subr.bf16.mxu0 %v364
      %489 = vmatpush1.bf16.msra.mxu0 %v363
      %490 = vmatprep.subr.bf16.mxu0 %v360
      %491 = vmatpush1.bf16.msra.mxu0 %v359
      %492 = vmatprep.subr.bf16.mxu0 %v356
      %493 = vmatpush1.bf16.msra.mxu0 %v355
      %494 = vmatprep.subr.bf16.mxu0 %v352
      %495 = vmatpush1.bf16.msra.mxu0 %v351
      %496 = vmatprep.subr.bf16.mxu0 %v348
      %497 = vmatpush1.bf16.msra.mxu0 %v347
      %498 = vmatprep.subr.bf16.mxu0 0
      %499 = vmatpush2.bf16.msra.mxu0 0
      %500 = vmatprep.subr.bf16.mxu0 0
      %501 = vmatpush2.bf16.msra.mxu0 0
      %502 = vmatprep.subr.bf16.mxu0 0
      %503 = vmatpush2.bf16.msra.mxu0 0
      %504 = vmatprep.subr.bf16.mxu0 0
      %505 = vmatpush2.bf16.msra.mxu0 0
      %506 = vmatprep.subr.bf16.mxu0 0
      %507 = vmatpush2.bf16.msra.mxu0 0
      %508 = vmatprep.subr.bf16.mxu0 0
      %509 = vmatpush2.bf16.msra.mxu0 0
      %510 = vmatprep.subr.bf16.mxu0 0
      %511 = vmatpush2.bf16.msra.mxu0 0
      %512 = vmatprep.subr.bf16.mxu0 0
      %513 = vmatpush2.bf16.msra.mxu0 0
      %514 = vmatprep.mubr.bf16.mxu0 0
      %515 = vmatmul.mubr.bf16.gmra.mxu0 %v241
      %v516 = vpop.f32.mrf.mxu0
      %v517 = vadd.f32 0.0, %v516
      %v518 = vpop.f32.mrf.mxu0
      %v519 = vadd.f32 0.0, %v518
      %v520 = vpop.f32.mrf.mxu0
      %v521 = vadd.f32 0.0, %v520
      %v522 = vpop.f32.mrf.mxu0
      %v523 = vadd.f32 0.0, %v522
      %524 = vmatprep.mubr.bf16.mxu0 0
      %525 = vmatmul.mubr.bf16.gmra.mxu0 %v242
      %v526 = vpop.f32.mrf.mxu0
      %v527 = vadd.f32 0.0, %v526
      %v528 = vpop.f32.mrf.mxu0
      %v529 = vadd.f32 0.0, %v528
      %v530 = vpop.f32.mrf.mxu0
      %v531 = vadd.f32 0.0, %v530
      %v532 = vpop.f32.mrf.mxu0
      %v533 = vadd.f32 0.0, %v532
      %534 = vmatprep.mubr.bf16.mxu0 0
      %535 = vmatmul.mubr.bf16.gmra.mxu0 %v243
      %v536 = vpop.f32.mrf.mxu0
      %v537 = vadd.f32 0.0, %v536
      %v538 = vpop.f32.mrf.mxu0
      %v539 = vadd.f32 0.0, %v538
      %v540 = vpop.f32.mrf.mxu0
      %v541 = vadd.f32 0.0, %v540
      %v542 = vpop.f32.mrf.mxu0
      %v543 = vadd.f32 0.0, %v542
      %544 = vmatprep.mubr.bf16.mxu0 0
      %545 = vmatmul.mubr.bf16.gmra.mxu0 %v244
      %v546 = vpop.f32.mrf.mxu0
      %v547 = vadd.f32 0.0, %v546
      %v548 = vpop.f32.mrf.mxu0
      %v549 = vadd.f32 0.0, %v548
      %v550 = vpop.f32.mrf.mxu0
      %v551 = vadd.f32 0.0, %v550
      %v552 = vpop.f32.mrf.mxu0
      %v553 = vadd.f32 0.0, %v552
      %554 = vdwg.mxu0
      %v555 = vadd.f32 %v444, %v446
      %v556 = vadd.f32 %v555, %v517
      %v557 = vadd.f32 %v556, %v519
      %558 = vadd.xlane.f32.xlu0 %v557
      %v559 = vpop.xlane.xlu0 %558
      %v560 = vadd.f32 %v448, %v450
      %v561 = vadd.f32 %v560, %v521
      %v562 = vadd.f32 %v561, %v523
      %563 = vadd.xlane.f32.xlu0 %v562
      %v564 = vpop.xlane.xlu0 %563
      %v565 = vadd.f32 %v454, %v456
      %v566 = vadd.f32 %v565, %v527
      %v567 = vadd.f32 %v566, %v529
      %568 = vadd.xlane.f32.xlu0 %v567
      %v569 = vpop.xlane.xlu0 %568
      %v570 = vadd.f32 %v458, %v460
      %v571 = vadd.f32 %v570, %v531
      %v572 = vadd.f32 %v571, %v533
      %573 = vadd.xlane.f32.xlu0 %v572
      %v574 = vpop.xlane.xlu0 %573
      %v575 = vadd.f32 %v464, %v466
      %v576 = vadd.f32 %v575, %v537
      %v577 = vadd.f32 %v576, %v539
      %578 = vadd.xlane.f32.xlu0 %v577
      %v579 = vpop.xlane.xlu0 %578
      %v580 = vadd.f32 %v468, %v470
      %v581 = vadd.f32 %v580, %v541
      %v582 = vadd.f32 %v581, %v543
      %583 = vadd.xlane.f32.xlu0 %v582
      %v584 = vpop.xlane.xlu0 %583
      %v585 = vadd.f32 %v474, %v476
      %v586 = vadd.f32 %v585, %v547
      %v587 = vadd.f32 %v586, %v549
      %588 = vadd.xlane.f32.xlu0 %v587
      %v589 = vpop.xlane.xlu0 %588
      %v590 = vadd.f32 %v478, %v480
      %v591 = vadd.f32 %v590, %v551
      %v592 = vadd.f32 %v591, %v553
      %593 = vadd.xlane.f32.xlu0 %v592
      %v594 = vpop.xlane.xlu0 %593
      %v595 = vrcp.pop 512.0
      %v596 = vmul.f32 %v559, %v595
      %v597 = vmul.f32 %v564, %v595
      %v598 = vmul.f32 %v569, %v595
      %v599 = vmul.f32 %v574, %v595
      %v600 = vmul.f32 %v579, %v595
      %v601 = vmul.f32 %v584, %v595
      %v602 = vmul.f32 %v589, %v595
      %v603 = vmul.f32 %v594, %v595
      %v604 = vsub.f32 %v444, %v596
      %v605 = vsub.f32 %v446, %v596
      %v606 = vsub.f32 %v517, %v596
      %v607 = vsub.f32 %v519, %v596
      %v608 = vsub.f32 %v448, %v597
      %v609 = vsub.f32 %v450, %v597
      %v610 = vsub.f32 %v521, %v597
      %v611 = vsub.f32 %v523, %v597
      %v612 = vsub.f32 %v454, %v598
      %v613 = vsub.f32 %v456, %v598
      %v614 = vsub.f32 %v527, %v598
      %v615 = vsub.f32 %v529, %v598
      %v616 = vsub.f32 %v458, %v599
      %v617 = vsub.f32 %v460, %v599
      %v618 = vsub.f32 %v531, %v599
      %v619 = vsub.f32 %v533, %v599
      %v620 = vsub.f32 %v464, %v600
      %v621 = vsub.f32 %v466, %v600
      %v622 = vsub.f32 %v537, %v600
      %v623 = vsub.f32 %v539, %v600
      %v624 = vsub.f32 %v468, %v601
      %v625 = vsub.f32 %v470, %v601
      %v626 = vsub.f32 %v541, %v601
      %v627 = vsub.f32 %v543, %v601
      %v628 = vsub.f32 %v474, %v602
      %v629 = vsub.f32 %v476, %v602
      %v630 = vsub.f32 %v547, %v602
      %v631 = vsub.f32 %v549, %v602
      %v632 = vsub.f32 %v478, %v603
      %v633 = vsub.f32 %v480, %v603
      %v634 = vsub.f32 %v551, %v603
      %v635 = vsub.f32 %v553, %v603
      %v636 = vmul.f32 %v604, %v604
      %v637 = vmul.f32 %v605, %v605
      %v638 = vmul.f32 %v606, %v606
      %v639 = vmul.f32 %v607, %v607
      %v640 = vmul.f32 %v608, %v608
      %v641 = vmul.f32 %v609, %v609
      %v642 = vmul.f32 %v610, %v610
      %v643 = vmul.f32 %v611, %v611
      %v644 = vmul.f32 %v612, %v612
      %v645 = vmul.f32 %v613, %v613
      %v646 = vmul.f32 %v614, %v614
      %v647 = vmul.f32 %v615, %v615
      %v648 = vmul.f32 %v616, %v616
      %v649 = vmul.f32 %v617, %v617
      %v650 = vmul.f32 %v618, %v618
      %v651 = vmul.f32 %v619, %v619
      %v652 = vmul.f32 %v620, %v620
      %v653 = vmul.f32 %v621, %v621
      %v654 = vmul.f32 %v622, %v622
      %v655 = vmul.f32 %v623, %v623
      %v656 = vmul.f32 %v624, %v624
      %v657 = vmul.f32 %v625, %v625
      %v658 = vmul.f32 %v626, %v626
      %v659 = vmul.f32 %v627, %v627
      %v660 = vmul.f32 %v628, %v628
      %v661 = vmul.f32 %v629, %v629
      %v662 = vmul.f32 %v630, %v630
      %v663 = vmul.f32 %v631, %v631
      %v664 = vmul.f32 %v632, %v632
      %v665 = vmul.f32 %v633, %v633
      %v666 = vmul.f32 %v634, %v634
      %v667 = vmul.f32 %v635, %v635
      %v668 = vadd.f32 %v636, %v637
      %v669 = vadd.f32 %v668, %v638
      %v670 = vadd.f32 %v669, %v639
      %671 = vadd.xlane.f32.xlu0 %v670
      %v672 = vpop.xlane.xlu0 %671
      %v673 = vadd.f32 %v640, %v641
      %v674 = vadd.f32 %v673, %v642
      %v675 = vadd.f32 %v674, %v643
      %676 = vadd.xlane.f32.xlu0 %v675
      %v677 = vpop.xlane.xlu0 %676
      %v678 = vadd.f32 %v644, %v645
      %v679 = vadd.f32 %v678, %v646
      %v680 = vadd.f32 %v679, %v647
      %681 = vadd.xlane.f32.xlu0 %v680
      %v682 = vpop.xlane.xlu0 %681
      %v683 = vadd.f32 %v648, %v649
      %v684 = vadd.f32 %v683, %v650
      %v685 = vadd.f32 %v684, %v651
      %686 = vadd.xlane.f32.xlu0 %v685
      %v687 = vpop.xlane.xlu0 %686
      %v688 = vadd.f32 %v652, %v653
      %v689 = vadd.f32 %v688, %v654
      %v690 = vadd.f32 %v689, %v655
      %691 = vadd.xlane.f32.xlu0 %v690
      %v692 = vpop.xlane.xlu0 %691
      %v693 = vadd.f32 %v656, %v657
      %v694 = vadd.f32 %v693, %v658
      %v695 = vadd.f32 %v694, %v659
      %696 = vadd.xlane.f32.xlu0 %v695
      %v697 = vpop.xlane.xlu0 %696
      %v698 = vadd.f32 %v660, %v661
      %v699 = vadd.f32 %v698, %v662
      %v700 = vadd.f32 %v699, %v663
      %701 = vadd.xlane.f32.xlu0 %v700
      %v702 = vpop.xlane.xlu0 %701
      %v703 = vadd.f32 %v664, %v665
      %v704 = vadd.f32 %v703, %v666
      %v705 = vadd.f32 %v704, %v667
      %706 = vadd.xlane.f32.xlu0 %v705
      %v707 = vpop.xlane.xlu0 %706
      %v708 = vmul.f32 %v672, %v595
      %v709 = vmul.f32 %v677, %v595
      %v710 = vmul.f32 %v682, %v595
      %v711 = vmul.f32 %v687, %v595
      %v712 = vmul.f32 %v692, %v595
      %v713 = vmul.f32 %v697, %v595
      %v714 = vmul.f32 %v702, %v595
      %v715 = vmul.f32 %v707, %v595
      %v716 = vadd.f32 %v708, 1e-05
      %v717 = vadd.f32 %v709, 1e-05
      %v718 = vadd.f32 %v710, 1e-05
      %v719 = vadd.f32 %v711, 1e-05
      %v720 = vadd.f32 %v712, 1e-05
      %v721 = vadd.f32 %v713, 1e-05
      %v722 = vadd.f32 %v714, 1e-05
      %v723 = vadd.f32 %v715, 1e-05
      %v724 = vrsqrt.pop %v716
      %v725 = vrsqrt.pop %v717
      %v726 = vrsqrt.pop %v718
      %v727 = vrsqrt.pop %v719
      %v728 = vrsqrt.pop %v720
      %v729 = vrsqrt.pop %v721
      %v730 = vrsqrt.pop %v722
      %v731 = vrsqrt.pop %v723
      %v732 = vmul.f32 %v604, %v724
      %v733 = vmul.f32 %v605, %v724
      %v734 = vmul.f32 %v606, %v724
      %v735 = vmul.f32 %v607, %v724
      %v736 = vmul.f32 %v608, %v725
      %v737 = vmul.f32 %v609, %v725
      %v738 = vmul.f32 %v610, %v725
      %v739 = vmul.f32 %v611, %v725
      %v740 = vmul.f32 %v612, %v726
      %v741 = vmul.f32 %v613, %v726
      %v742 = vmul.f32 %v614, %v726
      %v743 = vmul.f32 %v615, %v726
      %v744 = vmul.f32 %v616, %v727
      %v745 = vmul.f32 %v617, %v727
      %v746 = vmul.f32 %v618, %v727
      %v747 = vmul.f32 %v619, %v727
      %v748 = vmul.f32 %v620, %v728
      %v749 = vmul.f32 %v621, %v728
      %v750 = vmul.f32 %v622, %v728
      %v751 = vmul.f32 %v623, %v728
      %v752 = vmul.f32 %v624, %v729
      %v753 = vmul.f32 %v625, %v729
      %v754 = vmul.f32 %v626, %v729
      %v755 = vmul.f32 %v627, %v729
      %v756 = vmul.f32 %v628, %v730
      %v757 = vmul.f32 %v629, %v730
      %v758 = vmul.f32 %v630, %v730
      %v759 = vmul.f32 %v631, %v730
      %v760 = vmul.f32 %v632, %v731
      %v761 = vmul.f32 %v633, %v731
      %v762 = vmul.f32 %v634, %v731
      %v763 = vmul.f32 %v635, %v731
      %v764 = vmax.f32 %v732, 0.0
      %v765 = vmax.f32 %v733, 0.0
      %v766 = vmax.f32 %v734, 0.0
      %v767 = vmax.f32 %v735, 0.0
      %v768 = vmax.f32 %v736, 0.0
      %v769 = vmax.f32 %v737, 0.0
      %v770 = vmax.f32 %v738, 0.0
      %v771 = vmax.f32 %v739, 0.0
      %v772 = vmax.f32 %v740, 0.0
      %v773 = vmax.f32 %v741, 0.0
      %v774 = vmax.f32 %v742, 0.0
      %v775 = vmax.f32 %v743, 0.0
      %v776 = vmax.f32 %v744, 0.0
      %v777 = vmax.f32 %v745, 0.0
      %v778 = vmax.f32 %v746, 0.0
      %v779 = vmax.f32 %v747, 0.0
      %v780 = vpack.c.bf16 %v768, %v764
      %v781 = vpack.c.bf16 %v769, %v765
      %v782 = vpack.c.bf16 %v770, %v766
      %v783 = vpack.c.bf16 %v771, %v767
      %v784 = vpack.c.bf16 %v776, %v772
      %v785 = vpack.c.bf16 %v777, %v773
      %v786 = vpack.c.bf16 %v778, %v774
      %v787 = vpack.c.bf16 %v779, %v775
      %v796 = vunpack.c.l.b16 %v780
      %v797 = vunpack.c.l.b16 %v781
      %v798 = vunpack.c.l.b16 %v782
      %v799 = vunpack.c.l.b16 %v783
      %v800 = vunpack.c.h.b16 %v780
      %v801 = vunpack.c.h.b16 %v781
      %v802 = vunpack.c.h.b16 %v782
      %v803 = vunpack.c.h.b16 %v783
      %v804 = vunpack.c.l.b16 %v784
      %v805 = vunpack.c.l.b16 %v785
      %v806 = vunpack.c.l.b16 %v786
      %v807 = vunpack.c.l.b16 %v787
      %v808 = vunpack.c.h.b16 %v784
      %v809 = vunpack.c.h.b16 %v785
      %v810 = vunpack.c.h.b16 %v786
      %v811 = vunpack.c.h.b16 %v787
      %v812 = vpack.c.b16 %v797, %v796
      %v813 = vpack.c.b16 %v799, %v798
      %v814 = vpack.c.b16 %v801, %v800
      %v815 = vpack.c.b16 %v803, %v802
      %v816 = vpack.c.b16 %v805, %v804
      %v817 = vpack.c.b16 %v807, %v806
      %v818 = vpack.c.b16 %v809, %v808
      %v819 = vpack.c.b16 %v811, %v810
      %828 = vst [vmem:[%s178] sm:$0xff] %v812
      %829 = vst [vmem:[%s178 + $0x8] sm:$0xff] %v813
      %830 = vst [vmem:[%s178 + $0x10] sm:$0xff] %v814
      %831 = vst [vmem:[%s178 + $0x18] sm:$0xff] %v815
      %832 = vst [vmem:[%s178 + $0x20] sm:$0xff] %v816
      %833 = vst [vmem:[%s178 + $0x28] sm:$0xff] %v817
      %834 = vst [vmem:[%s178 + $0x30] sm:$0xff] %v818
      %835 = vst [vmem:[%s178 + $0x38] sm:$0xff] %v819
      %836 = vst [vmem:[%s183] sm:$0xff] %v748
      %837 = vst [vmem:[%s183 + $0x8] sm:$0xff] %v749
      %838 = vst [vmem:[%s183 + $0x10] sm:$0xff] %v750
      %839 = vst [vmem:[%s183 + $0x18] sm:$0xff] %v751
      %840 = vst [vmem:[%s183 + $0x20] sm:$0xff] %v752
      %841 = vst [vmem:[%s183 + $0x28] sm:$0xff] %v753
      %842 = vst [vmem:[%s183 + $0x30] sm:$0xff] %v754
      %843 = vst [vmem:[%s183 + $0x38] sm:$0xff] %v755
      %844 = vst [vmem:[%s183 + $0x40] sm:$0xff] %v756
      %845 = vst [vmem:[%s183 + $0x48] sm:$0xff] %v757
      %846 = vst [vmem:[%s183 + $0x50] sm:$0xff] %v758
      %847 = vst [vmem:[%s183 + $0x58] sm:$0xff] %v759
      %848 = vst [vmem:[%s183 + $0x60] sm:$0xff] %v760
      %849 = vst [vmem:[%s183 + $0x68] sm:$0xff] %v761
      %850 = vst [vmem:[%s183 + $0x70] sm:$0xff] %v762
      %851 = vst [vmem:[%s183 + $0x78] sm:$0xff] %v763
      %p852 = scmp.lt.s32.totalorder %s15, 1
      %s853 = scalar_select %p852, %s15, 1
      %s854 = smul.addr %s853, 16
      %s855 = smul.addr %s854, 4
      %s856 = scalar_lea.vmem %s2, %s855
      %p857 = scmp.lt.s32.totalorder %s15, 1
      %s858 = scalar_select %p857, %s15, 1
      %s859 = smul.addr %s858, 16
      %s860 = smul.addr %s859, 8
      %s861 = scalar_lea.vmem %s3, %s860
      // Predicated region
      $region29: #{resnet_layer_forward.2} parent=27 // pred_check
        %p862 = pneg %p80
      $region30: #{resnet_layer_forward.2} parent=27 // pred_check_branch
        %864 = sbr.rel (%p862) target = $region32
      $region31: #{resnet_layer_forward.2} parent=27 // pred_region
        _
      $region32: #{resnet_layer_forward.2} parent=27 // pred_fallthru
        _
      // Predicated region
      $region33: #{resnet_layer_forward.2} parent=27 // pred_check
        %p865 = pneg %p106
      $region34: #{resnet_layer_forward.2} parent=27 // pred_check_branch
        %867 = sbr.rel (%p865) target = $region36
      $region35: #{resnet_layer_forward.2} parent=27 // pred_region
        _
      $region36: #{resnet_layer_forward.2} parent=27 // pred_fallthru
        _
    $region28: #{resnet_layer_forward.2} parent=5 // pred_fallthru
      _
    %p868 = scmp.le.s32.totalorder 2, %s10
    // Predicated region
    $region37: #{resnet_layer_forward.2} parent=5 // pred_check
      %p869 = pneg %p868
    $region38: #{resnet_layer_forward.2} parent=5 // pred_check_branch
      %871 = sbr.rel (%p869) target = $region40
    $region39: #{resnet_layer_forward.2} parent=5 // pred_region
      %s872 = ssub.s32 %s10, 2
      // Predicated region
      $region41: #{resnet_layer_forward.2} parent=39 // pred_check
        %p873 = pneg %p86
      $region42: #{resnet_layer_forward.2} parent=39 // pred_check_branch
        %875 = sbr.rel (%p873) target = $region44
      $region43: #{resnet_layer_forward.2} parent=39 // pred_region
        %p876 = scmp.lt.s32.totalorder %s16, 1
        %s877 = scalar_select %p876, %s16, 1
        %s878 = smul.addr %s877, 16
        %s879 = smul.addr %s878, 4
        %s880 = scalar_lea.vmem %s2, %s879
      $region44: #{resnet_layer_forward.2} parent=39 // pred_fallthru
        _
      // Predicated region
      $region45: #{resnet_layer_forward.2} parent=39 // pred_check
        %p881 = pneg %p112
      $region46: #{resnet_layer_forward.2} parent=39 // pred_check_branch
        %883 = sbr.rel (%p881) target = $region48
      $region47: #{resnet_layer_forward.2} parent=39 // pred_region
        %p884 = scmp.lt.s32.totalorder %s16, 1
        %s885 = scalar_select %p884, %s16, 1
        %s886 = smul.addr %s885, 16
        %s887 = smul.addr %s886, 8
        %s888 = scalar_lea.vmem %s3, %s887
      $region48: #{resnet_layer_forward.2} parent=39 // pred_fallthru
        _
    $region40: #{resnet_layer_forward.2} parent=5 // pred_fallthru
      _
  $region6: #{resnet_layer_forward.2} parent=0 // loop_footer
    %s14 = sadd.s32 1, %s10
  $region7: #{resnet_layer_forward.2} parent=0 // loop_footer_branch
    %9 = sbr.rel target = $region3
  $region8: #{resnet_layer_forward.2} parent=0 // loop_exit
    _

// kernel: resnet_layer_forward.3
$region0: #{resnet_layer_forward.3}
  #allocation0 [shape = 'u32[]', space=smem, size = 0x4, offset = 0x4, fixed_abs, tag = 'smem constant byte address 0x4 - core index']
  #allocation1 [shape = 'u32[144,128]{1,0:T(1,128)}', space=vmem, size = 0x12000, scoped, tag = 'internal scratch']
  %s0 = inlined_call_operand.vmem [shape: bf16[2,896,512], index: 0, kind: input, shape index: {}]
  %s1 = inlined_call_operand.vmem [shape: bf16[32,896], index: 1, kind: input, shape index: {}]
  %s2 = inlined_call_operand.vmem [shape: f32[2,32,512], index: 2, kind: input, shape index: {}]
  %s3 = inlined_call_operand.vmem [shape: f32[2,32,512], index: 3, kind: output, shape index: {}]
  %s4 = sld [smem:[#allocation0]]
  $region45: #{resnet_layer_forward.3} parent=0
    _
  %s6 = ssub.s32 1, %s4
  %s7 = scalar_select 0, %s6, %s4
  loop: start=0, step=1, limit=4
  $region2: #{resnet_layer_forward.3} parent=0 // loop_pre_header
    _
  $region3: #{resnet_layer_forward.3} parent=0 // loop_header
    %s9 = sphi 0, %s13
    %p10 = scmp.ge.s32.totalorder %s9, 4
    %s19 = sphi 0, %s21
    %s22 = sphi 0, %s19
    %s23 = sphi 0, %s22
    %s39 = sphi 0, %s23
    %s43 = sphi 0, %s43
    %s45 = sphi 0, %s43
    %s46 = sphi 0, %s45
    %s60 = sphi 0, %s46
    %s66 = sphi 0, %s68
    %s69 = sphi 0, %s66
    %s70 = sphi 0, %s69
    %s86 = sphi 0, %s70
    %s92 = sphi 0, %s94
    %s95 = sphi 0, %s92
    %s96 = sphi 0, %s95
    %s112 = sphi 0, %s96
  $region4: #{resnet_layer_forward.3} parent=0 // loop_header_branch
    %12 = sbr.rel (%p10) target = $region8
  $region5: #{resnet_layer_forward.3} parent=0 // loop_body
    %s14 = ssub.s32 %s9, 1
    %s15 = ssub.s32 %s9, 2
    %s16 = sadd.s32 %s9, 1
    %s17 = ssub.s32 %s9, %s16
    %p18 = scmp.eq.s32.totalorder %s17, 0
    %s20 = sadd.s32 %s19, 1
    %s21 = scalar_select %p18, %s19, %s20
    %p24 = pneg %p18
    %p25 = scmp.eq.s32.totalorder %s9, 1
    %p26 = por %p24, %p25
    %p27 = scmp.ne.s32.totalorder %s19, %s22
    %p28 = scmp.eq.s32.totalorder %s9, 0
    %p29 = por %p27, %p28
    %p30 = scmp.ne.s32.totalorder %s19, %s22
    %p31 = scmp.eq.s32.totalorder %s14, 1
    %p32 = por %p30, %p31
    %p33 = scmp.ne.s32.totalorder %s22, %s23
    %p34 = scmp.eq.s32.totalorder %s14, 0
    %p35 = por %p33, %p34
    %p36 = scmp.ne.s32.totalorder %s22, %s23
    %p37 = scmp.eq.s32.totalorder %s15, 1
    %p38 = por %p36, %p37
    %p40 = scmp.ne.s32.totalorder %s23, %s39
    %p41 = scmp.eq.s32.totalorder %s15, 0
    %p42 = por %p40, %p41
    %s44 = sadd.s32 %s43, 1
    %p47 = scmp.eq.s32.totalorder %s9, 1
    %p48 = scmp.ne.s32.totalorder %s43, %s45
    %p49 = scmp.eq.s32.totalorder %s9, 0
    %p50 = por %p48, %p49
    %p51 = scmp.ne.s32.totalorder %s43, %s45
    %p52 = scmp.eq.s32.totalorder %s14, 1
    %p53 = por %p51, %p52
    %p54 = scmp.ne.s32.totalorder %s45, %s46
    %p55 = scmp.eq.s32.totalorder %s14, 0
    %p56 = por %p54, %p55
    %p57 = scmp.ne.s32.totalorder %s45, %s46
    %p58 = scmp.eq.s32.totalorder %s15, 1
    %p59 = por %p57, %p58
    %p61 = scmp.ne.s32.totalorder %s46, %s60
    %p62 = scmp.eq.s32.totalorder %s15, 0
    %p63 = por %p61, %p62
    %s64 = ssub.s32 %s9, %s16
    %p65 = scmp.eq.s32.totalorder %s64, 0
    %s67 = sadd.s32 %s66, 1
    %s68 = scalar_select %p65, %s66, %s67
    %p71 = pneg %p65
    %p72 = scmp.eq.s32.totalorder %s9, 1
    %p73 = por %p71, %p72
    %p74 = scmp.ne.s32.totalorder %s66, %s69
    %p75 = scmp.eq.s32.totalorder %s9, 0
    %p76 = por %p74, %p75
    %p77 = scmp.ne.s32.totalorder %s66, %s69
    %p78 = scmp.eq.s32.totalorder %s14, 1
    %p79 = por %p77, %p78
    %p80 = scmp.ne.s32.totalorder %s69, %s70
    %p81 = scmp.eq.s32.totalorder %s14, 0
    %p82 = por %p80, %p81
    %p83 = scmp.ne.s32.totalorder %s69, %s70
    %p84 = scmp.eq.s32.totalorder %s15, 1
    %p85 = por %p83, %p84
    %p87 = scmp.ne.s32.totalorder %s70, %s86
    %p88 = scmp.eq.s32.totalorder %s15, 0
    %p89 = por %p87, %p88
    %s90 = ssub.s32 %s9, %s16
    %p91 = scmp.eq.s32.totalorder %s90, 0
    %s93 = sadd.s32 %s92, 1
    %s94 = scalar_select %p91, %s92, %s93
    %p97 = pneg %p91
    %p98 = scmp.eq.s32.totalorder %s9, 1
    %p99 = por %p97, %p98
    %p100 = scmp.ne.s32.totalorder %s92, %s95
    %p101 = scmp.eq.s32.totalorder %s9, 0
    %p102 = por %p100, %p101
    %p103 = scmp.ne.s32.totalorder %s92, %s95
    %p104 = scmp.eq.s32.totalorder %s14, 1
    %p105 = por %p103, %p104
    %p106 = scmp.ne.s32.totalorder %s95, %s96
    %p107 = scmp.eq.s32.totalorder %s14, 0
    %p108 = por %p106, %p107
    %p109 = scmp.ne.s32.totalorder %s95, %s96
    %p110 = scmp.eq.s32.totalorder %s15, 1
    %p111 = por %p109, %p110
    %p113 = scmp.ne.s32.totalorder %s96, %s112
    %p114 = scmp.eq.s32.totalorder %s15, 0
    %p115 = por %p113, %p114
    %p116 = scmp.le.s32.totalorder 1, %s9
    %p117 = scmp.lt.s32.totalorder %s9, 3
    %p118 = pnand %p116, %p117
    %p119 = pneg %p118
    // Predicated region
    $region9: #{resnet_layer_forward.3} parent=5 // pred_check
      _
    $region10: #{resnet_layer_forward.3} parent=5 // pred_check_branch
      %121 = sbr.rel (%p118) target = $region12
    $region11: #{resnet_layer_forward.3} parent=5 // pred_region
      %s122 = ssub.s32 %s9, 1
      // Predicated region
      $region13: #{resnet_layer_forward.3} parent=11 // pred_check
        %p123 = pneg %p56
      $region14: #{resnet_layer_forward.3} parent=11 // pred_check_branch
        %125 = sbr.rel (%p123) target = $region16
      $region15: #{resnet_layer_forward.3} parent=11 // pred_region
        _
      $region16: #{resnet_layer_forward.3} parent=11 // pred_fallthru
        _
    $region12: #{resnet_layer_forward.3} parent=5 // pred_fallthru
      _
    %p126 = scmp.lt.s32.totalorder %s9, 2
    // Predicated region
    $region17: #{resnet_layer_forward.3} parent=5 // pred_check
      %p127 = pneg %p126
    $region18: #{resnet_layer_forward.3} parent=5 // pred_check_branch
      %129 = sbr.rel (%p127) target = $region20
    $region19: #{resnet_layer_forward.3} parent=5 // pred_region
      // Predicated region
      $region21: #{resnet_layer_forward.3} parent=19 // pred_check
        %p130 = pneg %p29
      $region22: #{resnet_layer_forward.3} parent=19 // pred_check_branch
        %132 = sbr.rel (%p130) target = $region24
      $region23: #{resnet_layer_forward.3} parent=19 // pred_region
        %p133 = scmp.lt.s32.totalorder %s9, 1
        %s134 = scalar_select %p133, %s9, 1
        %s135 = smul.addr %s134, 448
        %s136 = smul.addr %s135, 4
        %s137 = scalar_lea.vmem %s0, %s136
      $region24: #{resnet_layer_forward.3} parent=19 // pred_fallthru
        _
      // Predicated region
      $region25: #{resnet_layer_forward.3} parent=19 // pred_check
        %p138 = pneg %p76
      $region26: #{resnet_layer_forward.3} parent=19 // pred_check_branch
        %140 = sbr.rel (%p138) target = $region28
      $region27: #{resnet_layer_forward.3} parent=19 // pred_region
        %p141 = scmp.lt.s32.totalorder %s9, 1
        %s142 = scalar_select %p141, %s9, 1
        %s143 = smul.addr %s142, 16
        %s144 = smul.addr %s143, 8
        %s145 = scalar_lea.vmem %s2, %s144
      $region28: #{resnet_layer_forward.3} parent=19 // pred_fallthru
        _
    $region20: #{resnet_layer_forward.3} parent=5 // pred_fallthru
      _
    %p146 = scmp.le.s32.totalorder 1, %s9
    %p147 = scmp.lt.s32.totalorder %s9, 3
    %p148 = pnand %p146, %p147
    %p149 = pneg %p148
    // Predicated region
    $region29: #{resnet_layer_forward.3} parent=5 // pred_check
      _
    $region30: #{resnet_layer_forward.3} parent=5 // pred_check_branch
      %151 = sbr.rel (%p148) target = $region32
    $region31: #{resnet_layer_forward.3} parent=5 // pred_region
      %s152 = ssub.s32 %s9, 1
      %p153 = scmp.lt.s32.totalorder %s14, 1
      %s154 = scalar_select %p153, %s14, 1
      %s155 = smul.addr %s154, 448
      %s156 = smul.addr %s155, 4
      %s157 = scalar_lea.vmem %s0, %s156
      %p158 = pneg %p35
      %p159 = pneg %p32
      %p160 = pneg %p56
      %p161 = pneg %p53
      %p162 = scmp.lt.s32.totalorder %s14, 1
      %s163 = scalar_select %p162, %s14, 1
      %s164 = smul.addr %s163, 16
      %s165 = smul.addr %s164, 8
      %s166 = scalar_lea.vmem %s2, %s165
      %p167 = pneg %p82
      %p168 = pneg %p79
      %p169 = pneg %p108
      %p170 = pneg %p105
      %p171 = scmp.lt.s32.totalorder %s14, 1
      %s172 = scalar_select %p171, %s14, 1
      %s173 = smul.addr %s172, 16
      %s174 = smul.addr %s173, 8
      %s175 = scalar_lea.vmem %s3, %s174
      %p176 = scmp.lt.s32.totalorder %s14, 1
      %s177 = scalar_select %p176, %s14, 1
      %s178 = smul.addr %s177, 448
      %s179 = smul.addr %s178, 4
      %s180 = scalar_lea.vmem %s0, %s179
      %p181 = scmp.lt.s32.totalorder %s14, 1
      %s182 = scalar_select %p181, %s14, 1
      %s183 = smul.addr %s182, 16
      %s184 = smul.addr %s183, 8
      %s185 = scalar_lea.vmem %s2, %s184
      %p186 = scmp.lt.s32.totalorder %s14, 1
      %s187 = scalar_select %p186, %s14, 1
      %s188 = smul.addr %s187, 16
      %s189 = smul.addr %s188, 8
      %s190 = scalar_lea.vmem %s3, %s189
      %v192 = vld [vmem:[%s1] sm:$0xff]
      %v193 = vld [vmem:[%s1 + $0x8] sm:$0xff]
      %v194 = vld [vmem:[%s1 + $0x10] sm:$0xff]
      %v195 = vld [vmem:[%s1 + $0x18] sm:$0xf]
      %v196 = vld [vmem:[%s1 + $0x1c] sm:$0xff]
      %v197 = vld [vmem:[%s1 + $0x24] sm:$0xff]
      %v198 = vld [vmem:[%s1 + $0x2c] sm:$0xff]
      %v199 = vld [vmem:[%s1 + $0x34] sm:$0xf]
      %v200 = vld [vmem:[%s1 + $0x38] sm:$0xff]
      %v201 = vld [vmem:[%s1 + $0x40] sm:$0xff]
      %v202 = vld [vmem:[%s1 + $0x48] sm:$0xff]
      %v203 = vld [vmem:[%s1 + $0x50] sm:$0xf]
      %v204 = vld [vmem:[%s1 + $0x54] sm:$0xff]
      %v205 = vld [vmem:[%s1 + $0x5c] sm:$0xff]
      %v206 = vld [vmem:[%s1 + $0x64] sm:$0xff]
      %v207 = vld [vmem:[%s1 + $0x6c] sm:$0xf]
      %v208 = vld [vmem:[%s180] sm:$0xff]
      %v209 = vld [vmem:[%s180 + $0x8] sm:$0xff]
      %v210 = vld [vmem:[%s180 + $0x10] sm:$0xff]
      %v211 = vld [vmem:[%s180 + $0x18] sm:$0xff]
      %v212 = vld [vmem:[%s180 + $0x20] sm:$0xff]
      %v213 = vld [vmem:[%s180 + $0x28] sm:$0xff]
      %v214 = vld [vmem:[%s180 + $0x30] sm:$0xff]
      %v215 = vld [vmem:[%s180 + $0x38] sm:$0xff]
      %v216 = vld [vmem:[%s180 + $0x40] sm:$0xff]
      %v217 = vld [vmem:[%s180 + $0x48] sm:$0xff]
      %v218 = vld [vmem:[%s180 + $0x50] sm:$0xff]
      %v219 = vld [vmem:[%s180 + $0x58] sm:$0xff]
      %v220 = vld [vmem:[%s180 + $0x60] sm:$0xff]
      %v221 = vld [vmem:[%s180 + $0x68] sm:$0xff]
      %v222 = vld [vmem:[%s180 + $0x70] sm:$0xff]
      %v223 = vld [vmem:[%s180 + $0x78] sm:$0xff]
      %v224 = vld [vmem:[%s180 + $0x80] sm:$0xff]
      %v225 = vld [vmem:[%s180 + $0x88] sm:$0xff]
      %v226 = vld [vmem:[%s180 + $0x90] sm:$0xff]
      %v227 = vld [vmem:[%s180 + $0x98] sm:$0xff]
      %v228 = vld [vmem:[%s180 + $0xa0] sm:$0xff]
      %v229 = vld [vmem:[%s180 + $0xa8] sm:$0xff]
      %v230 = vld [vmem:[%s180 + $0xb0] sm:$0xff]
      %v231 = vld [vmem:[%s180 + $0xb8] sm:$0xff]
      %v232 = vld [vmem:[%s180 + $0xc0] sm:$0xff]
      %v233 = vld [vmem:[%s180 + $0xc8] sm:$0xff]
      %v234 = vld [vmem:[%s180 + $0xd0] sm:$0xff]
      %v235 = vld [vmem:[%s180 + $0xd8] sm:$0xff]
      %v236 = vld [vmem:[%s180 + $0xe0] sm:$0xff]
      %v237 = vld [vmem:[%s180 + $0xe8] sm:$0xff]
      %v238 = vld [vmem:[%s180 + $0xf0] sm:$0xff]
      %v239 = vld [vmem:[%s180 + $0xf8] sm:$0xff]
      %v240 = vld [vmem:[%s180 + $0x100] sm:$0xff]
      %v241 = vld [vmem:[%s180 + $0x108] sm:$0xff]
      %v242 = vld [vmem:[%s180 + $0x110] sm:$0xff]
      %v243 = vld [vmem:[%s180 + $0x118] sm:$0xff]
      %v244 = vld [vmem:[%s180 + $0x120] sm:$0xff]
      %v245 = vld [vmem:[%s180 + $0x128] sm:$0xff]
      %v246 = vld [vmem:[%s180 + $0x130] sm:$0xff]
      %v247 = vld [vmem:[%s180 + $0x138] sm:$0xff]
      %v248 = vld [vmem:[%s180 + $0x140] sm:$0xff]
      %v249 = vld [vmem:[%s180 + $0x148] sm:$0xff]
      %v250 = vld [vmem:[%s180 + $0x150] sm:$0xff]
      %v251 = vld [vmem:[%s180 + $0x158] sm:$0xff]
      %v252 = vld [vmem:[%s180 + $0x160] sm:$0xff]
      %v253 = vld [vmem:[%s180 + $0x168] sm:$0xff]
      %v254 = vld [vmem:[%s180 + $0x170] sm:$0xff]
      %v255 = vld [vmem:[%s180 + $0x178] sm:$0xff]
      %v256 = vld [vmem:[%s180 + $0x180] sm:$0xff]
      %v257 = vld [vmem:[%s180 + $0x188] sm:$0xff]
      %v258 = vld [vmem:[%s180 + $0x190] sm:$0xff]
      %v259 = vld [vmem:[%s180 + $0x198] sm:$0xff]
      %v260 = vld [vmem:[%s180 + $0x1a0] sm:$0xff]
      %v261 = vld [vmem:[%s180 + $0x1a8] sm:$0xff]
      %v262 = vld [vmem:[%s180 + $0x1b0] sm:$0xff]
      %v263 = vld [vmem:[%s180 + $0x1b8] sm:$0xff]
      %v264 = vld [vmem:[%s180 + $0x1c0] sm:$0xff]
      %v265 = vld [vmem:[%s180 + $0x1c8] sm:$0xff]
      %v266 = vld [vmem:[%s180 + $0x1d0] sm:$0xff]
      %v267 = vld [vmem:[%s180 + $0x1d8] sm:$0xff]
      %v268 = vld [vmem:[%s180 + $0x1e0] sm:$0xff]
      %v269 = vld [vmem:[%s180 + $0x1e8] sm:$0xff]
      %v270 = vld [vmem:[%s180 + $0x1f0] sm:$0xff]
      %v271 = vld [vmem:[%s180 + $0x1f8] sm:$0xff]
      %v272 = vld [vmem:[%s180 + $0x200] sm:$0xff]
      %v273 = vld [vmem:[%s180 + $0x208] sm:$0xff]
      %v274 = vld [vmem:[%s180 + $0x210] sm:$0xff]
      %v275 = vld [vmem:[%s180 + $0x218] sm:$0xff]
      %v276 = vld [vmem:[%s180 + $0x220] sm:$0xff]
      %v277 = vld [vmem:[%s180 + $0x228] sm:$0xff]
      %v278 = vld [vmem:[%s180 + $0x230] sm:$0xff]
      %v279 = vld [vmem:[%s180 + $0x238] sm:$0xff]
      %v280 = vld [vmem:[%s180 + $0x240] sm:$0xff]
      %v281 = vld [vmem:[%s180 + $0x248] sm:$0xff]
      %v282 = vld [vmem:[%s180 + $0x250] sm:$0xff]
      %v283 = vld [vmem:[%s180 + $0x258] sm:$0xff]
      %v284 = vld [vmem:[%s180 + $0x260] sm:$0xff]
      %v285 = vld [vmem:[%s180 + $0x268] sm:$0xff]
      %v286 = vld [vmem:[%s180 + $0x270] sm:$0xff]
      %v287 = vld [vmem:[%s180 + $0x278] sm:$0xff]
      %v288 = vld [vmem:[%s180 + $0x280] sm:$0xff]
      %v289 = vld [vmem:[%s180 + $0x288] sm:$0xff]
      %v290 = vld [vmem:[%s180 + $0x290] sm:$0xff]
      %v291 = vld [vmem:[%s180 + $0x298] sm:$0xff]
      %v292 = vld [vmem:[%s180 + $0x2a0] sm:$0xff]
      %v293 = vld [vmem:[%s180 + $0x2a8] sm:$0xff]
      %v294 = vld [vmem:[%s180 + $0x2b0] sm:$0xff]
      %v295 = vld [vmem:[%s180 + $0x2b8] sm:$0xff]
      %v296 = vld [vmem:[%s180 + $0x2c0] sm:$0xff]
      %v297 = vld [vmem:[%s180 + $0x2c8] sm:$0xff]
      %v298 = vld [vmem:[%s180 + $0x2d0] sm:$0xff]
      %v299 = vld [vmem:[%s180 + $0x2d8] sm:$0xff]
      %v300 = vld [vmem:[%s180 + $0x2e0] sm:$0xff]
      %v301 = vld [vmem:[%s180 + $0x2e8] sm:$0xff]
      %v302 = vld [vmem:[%s180 + $0x2f0] sm:$0xff]
      %v303 = vld [vmem:[%s180 + $0x2f8] sm:$0xff]
      %v304 = vld [vmem:[%s180 + $0x300] sm:$0xff]
      %v305 = vld [vmem:[%s180 + $0x308] sm:$0xff]
      %v306 = vld [vmem:[%s180 + $0x310] sm:$0xff]
      %v307 = vld [vmem:[%s180 + $0x318] sm:$0xff]
      %v308 = vld [vmem:[%s180 + $0x320] sm:$0xff]
      %v309 = vld [vmem:[%s180 + $0x328] sm:$0xff]
      %v310 = vld [vmem:[%s180 + $0x330] sm:$0xff]
      %v311 = vld [vmem:[%s180 + $0x338] sm:$0xff]
      %v312 = vld [vmem:[%s180 + $0x340] sm:$0xff]
      %v313 = vld [vmem:[%s180 + $0x348] sm:$0xff]
      %v314 = vld [vmem:[%s180 + $0x350] sm:$0xff]
      %v315 = vld [vmem:[%s180 + $0x358] sm:$0xff]
      %v316 = vld [vmem:[%s180 + $0x360] sm:$0xff]
      %v317 = vld [vmem:[%s180 + $0x368] sm:$0xff]
      %v318 = vld [vmem:[%s180 + $0x370] sm:$0xff]
      %v319 = vld [vmem:[%s180 + $0x378] sm:$0xff]
      %v320 = vld [vmem:[%s180 + $0x380] sm:$0xff]
      %v321 = vld [vmem:[%s180 + $0x388] sm:$0xff]
      %v322 = vld [vmem:[%s180 + $0x390] sm:$0xff]
      %v323 = vld [vmem:[%s180 + $0x398] sm:$0xff]
      %v324 = vld [vmem:[%s180 + $0x3a0] sm:$0xff]
      %v325 = vld [vmem:[%s180 + $0x3a8] sm:$0xff]
      %v326 = vld [vmem:[%s180 + $0x3b0] sm:$0xff]
      %v327 = vld [vmem:[%s180 + $0x3b8] sm:$0xff]
      %v328 = vld [vmem:[%s180 + $0x3c0] sm:$0xff]
      %v329 = vld [vmem:[%s180 + $0x3c8] sm:$0xff]
      %v330 = vld [vmem:[%s180 + $0x3d0] sm:$0xff]
      %v331 = vld [vmem:[%s180 + $0x3d8] sm:$0xff]
      %v332 = vld [vmem:[%s180 + $0x3e0] sm:$0xff]
      %v333 = vld [vmem:[%s180 + $0x3e8] sm:$0xff]
      %v334 = vld [vmem:[%s180 + $0x3f0] sm:$0xff]
      %v335 = vld [vmem:[%s180 + $0x3f8] sm:$0xff]
      %v336 = vld [vmem:[%s180 + $0x400] sm:$0xff]
      %v337 = vld [vmem:[%s180 + $0x408] sm:$0xff]
      %v338 = vld [vmem:[%s180 + $0x410] sm:$0xff]
      %v339 = vld [vmem:[%s180 + $0x418] sm:$0xff]
      %v340 = vld [vmem:[%s180 + $0x420] sm:$0xff]
      %v341 = vld [vmem:[%s180 + $0x428] sm:$0xff]
      %v342 = vld [vmem:[%s180 + $0x430] sm:$0xff]
      %v343 = vld [vmem:[%s180 + $0x438] sm:$0xff]
      %v344 = vld [vmem:[%s180 + $0x440] sm:$0xff]
      %v345 = vld [vmem:[%s180 + $0x448] sm:$0xff]
      %v346 = vld [vmem:[%s180 + $0x450] sm:$0xff]
      %v347 = vld [vmem:[%s180 + $0x458] sm:$0xff]
      %v348 = vld [vmem:[%s180 + $0x460] sm:$0xff]
      %v349 = vld [vmem:[%s180 + $0x468] sm:$0xff]
      %v350 = vld [vmem:[%s180 + $0x470] sm:$0xff]
      %v351 = vld [vmem:[%s180 + $0x478] sm:$0xff]
      %v352 = vld [vmem:[%s180 + $0x480] sm:$0xff]
      %v353 = vld [vmem:[%s180 + $0x488] sm:$0xff]
      %v354 = vld [vmem:[%s180 + $0x490] sm:$0xff]
      %v355 = vld [vmem:[%s180 + $0x498] sm:$0xff]
      %v356 = vld [vmem:[%s180 + $0x4a0] sm:$0xff]
      %v357 = vld [vmem:[%s180 + $0x4a8] sm:$0xff]
      %v358 = vld [vmem:[%s180 + $0x4b0] sm:$0xff]
      %v359 = vld [vmem:[%s180 + $0x4b8] sm:$0xff]
      %v360 = vld [vmem:[%s180 + $0x4c0] sm:$0xff]
      %v361 = vld [vmem:[%s180 + $0x4c8] sm:$0xff]
      %v362 = vld [vmem:[%s180 + $0x4d0] sm:$0xff]
      %v363 = vld [vmem:[%s180 + $0x4d8] sm:$0xff]
      %v364 = vld [vmem:[%s180 + $0x4e0] sm:$0xff]
      %v365 = vld [vmem:[%s180 + $0x4e8] sm:$0xff]
      %v366 = vld [vmem:[%s180 + $0x4f0] sm:$0xff]
      %v367 = vld [vmem:[%s180 + $0x4f8] sm:$0xff]
      %v368 = vld [vmem:[%s180 + $0x500] sm:$0xff]
      %v369 = vld [vmem:[%s180 + $0x508] sm:$0xff]
      %v370 = vld [vmem:[%s180 + $0x510] sm:$0xff]
      %v371 = vld [vmem:[%s180 + $0x518] sm:$0xff]
      %v372 = vld [vmem:[%s180 + $0x520] sm:$0xff]
      %v373 = vld [vmem:[%s180 + $0x528] sm:$0xff]
      %v374 = vld [vmem:[%s180 + $0x530] sm:$0xff]
      %v375 = vld [vmem:[%s180 + $0x538] sm:$0xff]
      %v376 = vld [vmem:[%s180 + $0x540] sm:$0xff]
      %v377 = vld [vmem:[%s180 + $0x548] sm:$0xff]
      %v378 = vld [vmem:[%s180 + $0x550] sm:$0xff]
      %v379 = vld [vmem:[%s180 + $0x558] sm:$0xff]
      %v380 = vld [vmem:[%s180 + $0x560] sm:$0xff]
      %v381 = vld [vmem:[%s180 + $0x568] sm:$0xff]
      %v382 = vld [vmem:[%s180 + $0x570] sm:$0xff]
      %v383 = vld [vmem:[%s180 + $0x578] sm:$0xff]
      %v384 = vld [vmem:[%s180 + $0x580] sm:$0xff]
      %v385 = vld [vmem:[%s180 + $0x588] sm:$0xff]
      %v386 = vld [vmem:[%s180 + $0x590] sm:$0xff]
      %v387 = vld [vmem:[%s180 + $0x598] sm:$0xff]
      %v388 = vld [vmem:[%s180 + $0x5a0] sm:$0xff]
      %v389 = vld [vmem:[%s180 + $0x5a8] sm:$0xff]
      %v390 = vld [vmem:[%s180 + $0x5b0] sm:$0xff]
      %v391 = vld [vmem:[%s180 + $0x5b8] sm:$0xff]
      %v392 = vld [vmem:[%s180 + $0x5c0] sm:$0xff]
      %v393 = vld [vmem:[%s180 + $0x5c8] sm:$0xff]
      %v394 = vld [vmem:[%s180 + $0x5d0] sm:$0xff]
      %v395 = vld [vmem:[%s180 + $0x5d8] sm:$0xff]
      %v396 = vld [vmem:[%s180 + $0x5e0] sm:$0xff]
      %v397 = vld [vmem:[%s180 + $0x5e8] sm:$0xff]
      %v398 = vld [vmem:[%s180 + $0x5f0] sm:$0xff]
      %v399 = vld [vmem:[%s180 + $0x5f8] sm:$0xff]
      %v400 = vld [vmem:[%s180 + $0x600] sm:$0xff]
      %v401 = vld [vmem:[%s180 + $0x608] sm:$0xff]
      %v402 = vld [vmem:[%s180 + $0x610] sm:$0xff]
      %v403 = vld [vmem:[%s180 + $0x618] sm:$0xff]
      %v404 = vld [vmem:[%s180 + $0x620] sm:$0xff]
      %v405 = vld [vmem:[%s180 + $0x628] sm:$0xff]
      %v406 = vld [vmem:[%s180 + $0x630] sm:$0xff]
      %v407 = vld [vmem:[%s180 + $0x638] sm:$0xff]
      %v408 = vld [vmem:[%s180 + $0x640] sm:$0xff]
      %v409 = vld [vmem:[%s180 + $0x648] sm:$0xff]
      %v410 = vld [vmem:[%s180 + $0x650] sm:$0xff]
      %v411 = vld [vmem:[%s180 + $0x658] sm:$0xff]
      %v412 = vld [vmem:[%s180 + $0x660] sm:$0xff]
      %v413 = vld [vmem:[%s180 + $0x668] sm:$0xff]
      %v414 = vld [vmem:[%s180 + $0x670] sm:$0xff]
      %v415 = vld [vmem:[%s180 + $0x678] sm:$0xff]
      %v416 = vld [vmem:[%s180 + $0x680] sm:$0xff]
      %v417 = vld [vmem:[%s180 + $0x688] sm:$0xff]
      %v418 = vld [vmem:[%s180 + $0x690] sm:$0xff]
      %v419 = vld [vmem:[%s180 + $0x698] sm:$0xff]
      %v420 = vld [vmem:[%s180 + $0x6a0] sm:$0xff]
      %v421 = vld [vmem:[%s180 + $0x6a8] sm:$0xff]
      %v422 = vld [vmem:[%s180 + $0x6b0] sm:$0xff]
      %v423 = vld [vmem:[%s180 + $0x6b8] sm:$0xff]
      %v424 = vld [vmem:[%s180 + $0x6c0] sm:$0xff]
      %v425 = vld [vmem:[%s180 + $0x6c8] sm:$0xff]
      %v426 = vld [vmem:[%s180 + $0x6d0] sm:$0xff]
      %v427 = vld [vmem:[%s180 + $0x6d8] sm:$0xff]
      %v428 = vld [vmem:[%s180 + $0x6e0] sm:$0xff]
      %v429 = vld [vmem:[%s180 + $0x6e8] sm:$0xff]
      %v430 = vld [vmem:[%s180 + $0x6f0] sm:$0xff]
      %v431 = vld [vmem:[%s180 + $0x6f8] sm:$0xff]
      %v448 = vunpack.c.l.b16 %v192
      %v449 = vunpack.c.h.b16 %v192
      %v450 = vunpack.c.l.b16 %v193
      %v451 = vunpack.c.h.b16 %v193
      %v452 = vunpack.c.l.b16 %v194
      %v453 = vunpack.c.h.b16 %v194
      %v454 = vunpack.c.l.b16 %v195
      %v455 = vunpack.c.l.b16 %v196
      %v456 = vunpack.c.h.b16 %v196
      %v457 = vunpack.c.l.b16 %v197
      %v458 = vunpack.c.h.b16 %v197
      %v459 = vunpack.c.l.b16 %v198
      %v460 = vunpack.c.h.b16 %v198
      %v461 = vunpack.c.l.b16 %v199
      %v462 = vunpack.c.l.b16 %v200
      %v463 = vunpack.c.h.b16 %v200
      %v464 = vunpack.c.l.b16 %v201
      %v465 = vunpack.c.h.b16 %v201
      %v466 = vunpack.c.l.b16 %v202
      %v467 = vunpack.c.h.b16 %v202
      %v468 = vunpack.c.l.b16 %v203
      %v469 = vunpack.c.l.b16 %v204
      %v470 = vunpack.c.h.b16 %v204
      %v471 = vunpack.c.l.b16 %v205
      %v472 = vunpack.c.h.b16 %v205
      %v473 = vunpack.c.l.b16 %v206
      %v474 = vunpack.c.h.b16 %v206
      %v475 = vunpack.c.l.b16 %v207
      %v476 = vpack.c.b16 %v455, %v448
      %v477 = vpack.c.b16 %v456, %v449
      %v478 = vpack.c.b16 %v457, %v450
      %v479 = vpack.c.b16 %v458, %v451
      %v480 = vpack.c.b16 %v459, %v452
      %v481 = vpack.c.b16 %v460, %v453
      %v482 = vpack.c.b16 %v461, %v454
      %v483 = vpack.c.b16 %v469, %v462
      %v484 = vpack.c.b16 %v470, %v463
      %v485 = vpack.c.b16 %v471, %v464
      %v486 = vpack.c.b16 %v472, %v465
      %v487 = vpack.c.b16 %v473, %v466
      %v488 = vpack.c.b16 %v474, %v467
      %v489 = vpack.c.b16 %v475, %v468
      %v728 = vunpack.c.l.b16 %v208
      %v729 = vunpack.c.h.b16 %v208
      %v730 = vunpack.c.l.b16 %v209
      %v731 = vunpack.c.h.b16 %v209
      %v732 = vunpack.c.l.b16 %v210
      %v733 = vunpack.c.h.b16 %v210
      %v734 = vunpack.c.l.b16 %v211
      %v735 = vunpack.c.h.b16 %v211
      %v736 = vunpack.c.l.b16 %v212
      %v737 = vunpack.c.h.b16 %v212
      %v738 = vunpack.c.l.b16 %v213
      %v739 = vunpack.c.h.b16 %v213
      %v740 = vunpack.c.l.b16 %v214
      %v741 = vunpack.c.h.b16 %v214
      %v742 = vunpack.c.l.b16 %v215
      %v743 = vunpack.c.h.b16 %v215
      %v744 = vunpack.c.l.b16 %v216
      %v745 = vunpack.c.h.b16 %v216
      %v746 = vunpack.c.l.b16 %v217
      %v747 = vunpack.c.h.b16 %v217
      %v748 = vunpack.c.l.b16 %v218
      %v749 = vunpack.c.h.b16 %v218
      %v750 = vunpack.c.l.b16 %v219
      %v751 = vunpack.c.h.b16 %v219
      %v752 = vunpack.c.l.b16 %v220
      %v753 = vunpack.c.h.b16 %v220
      %v754 = vunpack.c.l.b16 %v221
      %v755 = vunpack.c.h.b16 %v221
      %v756 = vunpack.c.l.b16 %v222
      %v757 = vunpack.c.h.b16 %v222
      %v758 = vunpack.c.l.b16 %v223
      %v759 = vunpack.c.h.b16 %v223
      %v760 = vunpack.c.l.b16 %v224
      %v761 = vunpack.c.h.b16 %v224
      %v762 = vunpack.c.l.b16 %v225
      %v763 = vunpack.c.h.b16 %v225
      %v764 = vunpack.c.l.b16 %v226
      %v765 = vunpack.c.h.b16 %v226
      %v766 = vunpack.c.l.b16 %v227
      %v767 = vunpack.c.h.b16 %v227
      %v768 = vunpack.c.l.b16 %v228
      %v769 = vunpack.c.h.b16 %v228
      %v770 = vunpack.c.l.b16 %v229
      %v771 = vunpack.c.h.b16 %v229
      %v772 = vunpack.c.l.b16 %v230
      %v773 = vunpack.c.h.b16 %v230
      %v774 = vunpack.c.l.b16 %v231
      %v775 = vunpack.c.h.b16 %v231
      %v776 = vunpack.c.l.b16 %v232
      %v777 = vunpack.c.h.b16 %v232
      %v778 = vunpack.c.l.b16 %v233
      %v779 = vunpack.c.h.b16 %v233
      %v780 = vunpack.c.l.b16 %v234
      %v781 = vunpack.c.h.b16 %v234
      %v782 = vunpack.c.l.b16 %v235
      %v783 = vunpack.c.h.b16 %v235
      %v784 = vunpack.c.l.b16 %v236
      %v785 = vunpack.c.h.b16 %v236
      %v786 = vunpack.c.l.b16 %v237
      %v787 = vunpack.c.h.b16 %v237
      %v788 = vunpack.c.l.b16 %v238
      %v789 = vunpack.c.h.b16 %v238
      %v790 = vunpack.c.l.b16 %v239
      %v791 = vunpack.c.h.b16 %v239
      %v792 = vunpack.c.l.b16 %v240
      %v793 = vunpack.c.h.b16 %v240
      %v794 = vunpack.c.l.b16 %v241
      %v795 = vunpack.c.h.b16 %v241
      %v796 = vunpack.c.l.b16 %v242
      %v797 = vunpack.c.h.b16 %v242
      %v798 = vunpack.c.l.b16 %v243
      %v799 = vunpack.c.h.b16 %v243
      %v800 = vunpack.c.l.b16 %v244
      %v801 = vunpack.c.h.b16 %v244
      %v802 = vunpack.c.l.b16 %v245
      %v803 = vunpack.c.h.b16 %v245
      %v804 = vunpack.c.l.b16 %v246
      %v805 = vunpack.c.h.b16 %v246
      %v806 = vunpack.c.l.b16 %v247
      %v807 = vunpack.c.h.b16 %v247
      %v808 = vunpack.c.l.b16 %v248
      %v809 = vunpack.c.h.b16 %v248
      %v810 = vunpack.c.l.b16 %v249
      %v811 = vunpack.c.h.b16 %v249
      %v812 = vunpack.c.l.b16 %v250
      %v813 = vunpack.c.h.b16 %v250
      %v814 = vunpack.c.l.b16 %v251
      %v815 = vunpack.c.h.b16 %v251
      %v816 = vunpack.c.l.b16 %v252
      %v817 = vunpack.c.h.b16 %v252
      %v818 = vunpack.c.l.b16 %v253
      %v819 = vunpack.c.h.b16 %v253
      %v820 = vunpack.c.l.b16 %v254
      %v821 = vunpack.c.h.b16 %v254
      %v822 = vunpack.c.l.b16 %v255
      %v823 = vunpack.c.h.b16 %v255
      %v824 = vunpack.c.l.b16 %v256
      %v825 = vunpack.c.h.b16 %v256
      %v826 = vunpack.c.l.b16 %v257
      %v827 = vunpack.c.h.b16 %v257
      %v828 = vunpack.c.l.b16 %v258
      %v829 = vunpack.c.h.b16 %v258
      %v830 = vunpack.c.l.b16 %v259
      %v831 = vunpack.c.h.b16 %v259
      %v832 = vunpack.c.l.b16 %v260
      %v833 = vunpack.c.h.b16 %v260
      %v834 = vunpack.c.l.b16 %v261
      %v835 = vunpack.c.h.b16 %v261
      %v836 = vunpack.c.l.b16 %v262
      %v837 = vunpack.c.h.b16 %v262
      %v838 = vunpack.c.l.b16 %v263
      %v839 = vunpack.c.h.b16 %v263
      %v840 = vunpack.c.l.b16 %v264
      %v841 = vunpack.c.h.b16 %v264
      %v842 = vunpack.c.l.b16 %v265
      %v843 = vunpack.c.h.b16 %v265
      %v844 = vunpack.c.l.b16 %v266
      %v845 = vunpack.c.h.b16 %v266
      %v846 = vunpack.c.l.b16 %v267
      %v847 = vunpack.c.h.b16 %v267
      %v848 = vunpack.c.l.b16 %v268
      %v849 = vunpack.c.h.b16 %v268
      %v850 = vunpack.c.l.b16 %v269
      %v851 = vunpack.c.h.b16 %v269
      %v852 = vunpack.c.l.b16 %v270
      %v853 = vunpack.c.h.b16 %v270
      %v854 = vunpack.c.l.b16 %v271
      %v855 = vunpack.c.h.b16 %v271
      %v856 = vunpack.c.l.b16 %v272
      %v857 = vunpack.c.h.b16 %v272
      %v858 = vunpack.c.l.b16 %v273
      %v859 = vunpack.c.h.b16 %v273
      %v860 = vunpack.c.l.b16 %v274
      %v861 = vunpack.c.h.b16 %v274
      %v862 = vunpack.c.l.b16 %v275
      %v863 = vunpack.c.h.b16 %v275
      %v864 = vunpack.c.l.b16 %v276
      %v865 = vunpack.c.h.b16 %v276
      %v866 = vunpack.c.l.b16 %v277
      %v867 = vunpack.c.h.b16 %v277
      %v868 = vunpack.c.l.b16 %v278
      %v869 = vunpack.c.h.b16 %v278
      %v870 = vunpack.c.l.b16 %v279
      %v871 = vunpack.c.h.b16 %v279
      %v872 = vunpack.c.l.b16 %v280
      %v873 = vunpack.c.h.b16 %v280
      %v874 = vunpack.c.l.b16 %v281
      %v875 = vunpack.c.h.b16 %v281
      %v876 = vunpack.c.l.b16 %v282
      %v877 = vunpack.c.h.b16 %v282
      %v878 = vunpack.c.l.b16 %v283
      %v879 = vunpack.c.h.b16 %v283
      %v880 = vunpack.c.l.b16 %v284
      %v881 = vunpack.c.h.b16 %v284
      %v882 = vunpack.c.l.b16 %v285
      %v883 = vunpack.c.h.b16 %v285
      %v884 = vunpack.c.l.b16 %v286
      %v885 = vunpack.c.h.b16 %v286
      %v886 = vunpack.c.l.b16 %v287
      %v887 = vunpack.c.h.b16 %v287
      %v888 = vunpack.c.l.b16 %v288
      %v889 = vunpack.c.h.b16 %v288
      %v890 = vunpack.c.l.b16 %v289
      %v891 = vunpack.c.h.b16 %v289
      %v892 = vunpack.c.l.b16 %v290
      %v893 = vunpack.c.h.b16 %v290
      %v894 = vunpack.c.l.b16 %v291
      %v895 = vunpack.c.h.b16 %v291
      %v896 = vunpack.c.l.b16 %v292
      %v897 = vunpack.c.h.b16 %v292
      %v898 = vunpack.c.l.b16 %v293
      %v899 = vunpack.c.h.b16 %v293
      %v900 = vunpack.c.l.b16 %v294
      %v901 = vunpack.c.h.b16 %v294
      %v902 = vunpack.c.l.b16 %v295
      %v903 = vunpack.c.h.b16 %v295
      %v904 = vunpack.c.l.b16 %v296
      %v905 = vunpack.c.h.b16 %v296
      %v906 = vunpack.c.l.b16 %v297
      %v907 = vunpack.c.h.b16 %v297
      %v908 = vunpack.c.l.b16 %v298
      %v909 = vunpack.c.h.b16 %v298
      %v910 = vunpack.c.l.b16 %v299
      %v911 = vunpack.c.h.b16 %v299
      %v912 = vunpack.c.l.b16 %v300
      %v913 = vunpack.c.h.b16 %v300
      %v914 = vunpack.c.l.b16 %v301
      %v915 = vunpack.c.h.b16 %v301
      %v916 = vunpack.c.l.b16 %v302
      %v917 = vunpack.c.h.b16 %v302
      %v918 = vunpack.c.l.b16 %v303
      %v919 = vunpack.c.h.b16 %v303
      %v920 = vunpack.c.l.b16 %v304
      %v921 = vunpack.c.h.b16 %v304
      %v922 = vunpack.c.l.b16 %v305
      %v923 = vunpack.c.h.b16 %v305
      %v924 = vunpack.c.l.b16 %v306
      %v925 = vunpack.c.h.b16 %v306
      %v926 = vunpack.c.l.b16 %v307
      %v927 = vunpack.c.h.b16 %v307
      %v928 = vunpack.c.l.b16 %v308
      %v929 = vunpack.c.h.b16 %v308
      %v930 = vunpack.c.l.b16 %v309
      %v931 = vunpack.c.h.b16 %v309
      %v932 = vunpack.c.l.b16 %v310
      %v933 = vunpack.c.h.b16 %v310
      %v934 = vunpack.c.l.b16 %v311
      %v935 = vunpack.c.h.b16 %v311
      %v936 = vunpack.c.l.b16 %v312
      %v937 = vunpack.c.h.b16 %v312
      %v938 = vunpack.c.l.b16 %v313
      %v939 = vunpack.c.h.b16 %v313
      %v940 = vunpack.c.l.b16 %v314
      %v941 = vunpack.c.h.b16 %v314
      %v942 = vunpack.c.l.b16 %v315
      %v943 = vunpack.c.h.b16 %v315
      %v944 = vunpack.c.l.b16 %v316
      %v945 = vunpack.c.h.b16 %v316
      %v946 = vunpack.c.l.b16 %v317
      %v947 = vunpack.c.h.b16 %v317
      %v948 = vunpack.c.l.b16 %v318
      %v949 = vunpack.c.h.b16 %v318
      %v950 = vunpack.c.l.b16 %v319
      %v951 = vunpack.c.h.b16 %v319
      %v952 = vunpack.c.l.b16 %v320
      %v953 = vunpack.c.h.b16 %v320
      %v954 = vunpack.c.l.b16 %v321
      %v955 = vunpack.c.h.b16 %v321
      %v956 = vunpack.c.l.b16 %v322
      %v957 = vunpack.c.h.b16 %v322
      %v958 = vunpack.c.l.b16 %v323
      %v959 = vunpack.c.h.b16 %v323
      %v960 = vunpack.c.l.b16 %v324
      %v961 = vunpack.c.h.b16 %v324
      %v962 = vunpack.c.l.b16 %v325
      %v963 = vunpack.c.h.b16 %v325
      %v964 = vunpack.c.l.b16 %v326
      %v965 = vunpack.c.h.b16 %v326
      %v966 = vunpack.c.l.b16 %v327
      %v967 = vunpack.c.h.b16 %v327
      %v968 = vunpack.c.l.b16 %v328
      %v969 = vunpack.c.h.b16 %v328
      %v970 = vunpack.c.l.b16 %v329
      %v971 = vunpack.c.h.b16 %v329
      %v972 = vunpack.c.l.b16 %v330
      %v973 = vunpack.c.h.b16 %v330
      %v974 = vunpack.c.l.b16 %v331
      %v975 = vunpack.c.h.b16 %v331
      %v976 = vunpack.c.l.b16 %v332
      %v977 = vunpack.c.h.b16 %v332
      %v978 = vunpack.c.l.b16 %v333
      %v979 = vunpack.c.h.b16 %v333
      %v980 = vunpack.c.l.b16 %v334
      %v981 = vunpack.c.h.b16 %v334
      %v982 = vunpack.c.l.b16 %v335
      %v983 = vunpack.c.h.b16 %v335
      %v984 = vunpack.c.l.b16 %v336
      %v985 = vunpack.c.h.b16 %v336
      %v986 = vunpack.c.l.b16 %v337
      %v987 = vunpack.c.h.b16 %v337
      %v988 = vunpack.c.l.b16 %v338
      %v989 = vunpack.c.h.b16 %v338
      %v990 = vunpack.c.l.b16 %v339
      %v991 = vunpack.c.h.b16 %v339
      %v992 = vunpack.c.l.b16 %v340
      %v993 = vunpack.c.h.b16 %v340
      %v994 = vunpack.c.l.b16 %v341
      %v995 = vunpack.c.h.b16 %v341
      %v996 = vunpack.c.l.b16 %v342
      %v997 = vunpack.c.h.b16 %v342
      %v998 = vunpack.c.l.b16 %v343
      %v999 = vunpack.c.h.b16 %v343
      %v1000 = vunpack.c.l.b16 %v344
      %v1001 = vunpack.c.h.b16 %v344
      %v1002 = vunpack.c.l.b16 %v345
      %v1003 = vunpack.c.h.b16 %v345
      %v1004 = vunpack.c.l.b16 %v346
      %v1005 = vunpack.c.h.b16 %v346
      %v1006 = vunpack.c.l.b16 %v347
      %v1007 = vunpack.c.h.b16 %v347
      %v1008 = vunpack.c.l.b16 %v348
      %v1009 = vunpack.c.h.b16 %v348
      %v1010 = vunpack.c.l.b16 %v349
      %v1011 = vunpack.c.h.b16 %v349
      %v1012 = vunpack.c.l.b16 %v350
      %v1013 = vunpack.c.h.b16 %v350
      %v1014 = vunpack.c.l.b16 %v351
      %v1015 = vunpack.c.h.b16 %v351
      %v1016 = vunpack.c.l.b16 %v352
      %v1017 = vunpack.c.h.b16 %v352
      %v1018 = vunpack.c.l.b16 %v353
      %v1019 = vunpack.c.h.b16 %v353
      %v1020 = vunpack.c.l.b16 %v354
      %v1021 = vunpack.c.h.b16 %v354
      %v1022 = vunpack.c.l.b16 %v355
      %v1023 = vunpack.c.h.b16 %v355
      %v1024 = vunpack.c.l.b16 %v356
      %v1025 = vunpack.c.h.b16 %v356
      %v1026 = vunpack.c.l.b16 %v357
      %v1027 = vunpack.c.h.b16 %v357
      %v1028 = vunpack.c.l.b16 %v358
      %v1029 = vunpack.c.h.b16 %v358
      %v1030 = vunpack.c.l.b16 %v359
      %v1031 = vunpack.c.h.b16 %v359
      %v1032 = vunpack.c.l.b16 %v360
      %v1033 = vunpack.c.h.b16 %v360
      %v1034 = vunpack.c.l.b16 %v361
      %v1035 = vunpack.c.h.b16 %v361
      %v1036 = vunpack.c.l.b16 %v362
      %v1037 = vunpack.c.h.b16 %v362
      %v1038 = vunpack.c.l.b16 %v363
      %v1039 = vunpack.c.h.b16 %v363
      %v1040 = vunpack.c.l.b16 %v364
      %v1041 = vunpack.c.h.b16 %v364
      %v1042 = vunpack.c.l.b16 %v365
      %v1043 = vunpack.c.h.b16 %v365
      %v1044 = vunpack.c.l.b16 %v366
      %v1045 = vunpack.c.h.b16 %v366
      %v1046 = vunpack.c.l.b16 %v367
      %v1047 = vunpack.c.h.b16 %v367
      %v1048 = vunpack.c.l.b16 %v368
      %v1049 = vunpack.c.h.b16 %v368
      %v1050 = vunpack.c.l.b16 %v369
      %v1051 = vunpack.c.h.b16 %v369
      %v1052 = vunpack.c.l.b16 %v370
      %v1053 = vunpack.c.h.b16 %v370
      %v1054 = vunpack.c.l.b16 %v371
      %v1055 = vunpack.c.h.b16 %v371
      %v1056 = vunpack.c.l.b16 %v372
      %v1057 = vunpack.c.h.b16 %v372
      %v1058 = vunpack.c.l.b16 %v373
      %v1059 = vunpack.c.h.b16 %v373
      %v1060 = vunpack.c.l.b16 %v374
      %v1061 = vunpack.c.h.b16 %v374
      %v1062 = vunpack.c.l.b16 %v375
      %v1063 = vunpack.c.h.b16 %v375
      %v1064 = vunpack.c.l.b16 %v376
      %v1065 = vunpack.c.h.b16 %v376
      %v1066 = vunpack.c.l.b16 %v377
      %v1067 = vunpack.c.h.b16 %v377
      %v1068 = vunpack.c.l.b16 %v378
      %v1069 = vunpack.c.h.b16 %v378
      %v1070 = vunpack.c.l.b16 %v379
      %v1071 = vunpack.c.h.b16 %v379
      %v1072 = vunpack.c.l.b16 %v380
      %v1073 = vunpack.c.h.b16 %v380
      %v1074 = vunpack.c.l.b16 %v381
      %v1075 = vunpack.c.h.b16 %v381
      %v1076 = vunpack.c.l.b16 %v382
      %v1077 = vunpack.c.h.b16 %v382
      %v1078 = vunpack.c.l.b16 %v383
      %v1079 = vunpack.c.h.b16 %v383
      %v1080 = vunpack.c.l.b16 %v384
      %v1081 = vunpack.c.h.b16 %v384
      %v1082 = vunpack.c.l.b16 %v385
      %v1083 = vunpack.c.h.b16 %v385
      %v1084 = vunpack.c.l.b16 %v386
      %v1085 = vunpack.c.h.b16 %v386
      %v1086 = vunpack.c.l.b16 %v387
      %v1087 = vunpack.c.h.b16 %v387
      %v1088 = vunpack.c.l.b16 %v388
      %v1089 = vunpack.c.h.b16 %v388
      %v1090 = vunpack.c.l.b16 %v389
      %v1091 = vunpack.c.h.b16 %v389
      %v1092 = vunpack.c.l.b16 %v390
      %v1093 = vunpack.c.h.b16 %v390
      %v1094 = vunpack.c.l.b16 %v391
      %v1095 = vunpack.c.h.b16 %v391
      %v1096 = vunpack.c.l.b16 %v392
      %v1097 = vunpack.c.h.b16 %v392
      %v1098 = vunpack.c.l.b16 %v393
      %v1099 = vunpack.c.h.b16 %v393
      %v1100 = vunpack.c.l.b16 %v394
      %v1101 = vunpack.c.h.b16 %v394
      %v1102 = vunpack.c.l.b16 %v395
      %v1103 = vunpack.c.h.b16 %v395
      %v1104 = vunpack.c.l.b16 %v396
      %v1105 = vunpack.c.h.b16 %v396
      %v1106 = vunpack.c.l.b16 %v397
      %v1107 = vunpack.c.h.b16 %v397
      %v1108 = vunpack.c.l.b16 %v398
      %v1109 = vunpack.c.h.b16 %v398
      %v1110 = vunpack.c.l.b16 %v399
      %v1111 = vunpack.c.h.b16 %v399
      %v1112 = vunpack.c.l.b16 %v400
      %v1113 = vunpack.c.h.b16 %v400
      %v1114 = vunpack.c.l.b16 %v401
      %v1115 = vunpack.c.h.b16 %v401
      %v1116 = vunpack.c.l.b16 %v402
      %v1117 = vunpack.c.h.b16 %v402
      %v1118 = vunpack.c.l.b16 %v403
      %v1119 = vunpack.c.h.b16 %v403
      %v1120 = vunpack.c.l.b16 %v404
      %v1121 = vunpack.c.h.b16 %v404
      %v1122 = vunpack.c.l.b16 %v405
      %v1123 = vunpack.c.h.b16 %v405
      %v1124 = vunpack.c.l.b16 %v406
      %v1125 = vunpack.c.h.b16 %v406
      %v1126 = vunpack.c.l.b16 %v407
      %v1127 = vunpack.c.h.b16 %v407
      %v1128 = vunpack.c.l.b16 %v408
      %v1129 = vunpack.c.h.b16 %v408
      %v1130 = vunpack.c.l.b16 %v409
      %v1131 = vunpack.c.h.b16 %v409
      %v1132 = vunpack.c.l.b16 %v410
      %v1133 = vunpack.c.h.b16 %v410
      %v1134 = vunpack.c.l.b16 %v411
      %v1135 = vunpack.c.h.b16 %v411
      %v1136 = vunpack.c.l.b16 %v412
      %v1137 = vunpack.c.h.b16 %v412
      %v1138 = vunpack.c.l.b16 %v413
      %v1139 = vunpack.c.h.b16 %v413
      %v1140 = vunpack.c.l.b16 %v414
      %v1141 = vunpack.c.h.b16 %v414
      %v1142 = vunpack.c.l.b16 %v415
      %v1143 = vunpack.c.h.b16 %v415
      %v1144 = vunpack.c.l.b16 %v416
      %v1145 = vunpack.c.h.b16 %v416
      %v1146 = vunpack.c.l.b16 %v417
      %v1147 = vunpack.c.h.b16 %v417
      %v1148 = vunpack.c.l.b16 %v418
      %v1149 = vunpack.c.h.b16 %v418
      %v1150 = vunpack.c.l.b16 %v419
      %v1151 = vunpack.c.h.b16 %v419
      %v1152 = vunpack.c.l.b16 %v420
      %v1153 = vunpack.c.h.b16 %v420
      %v1154 = vunpack.c.l.b16 %v421
      %v1155 = vunpack.c.h.b16 %v421
      %v1156 = vunpack.c.l.b16 %v422
      %v1157 = vunpack.c.h.b16 %v422
      %v1158 = vunpack.c.l.b16 %v423
      %v1159 = vunpack.c.h.b16 %v423
      %v1160 = vunpack.c.l.b16 %v424
      %v1161 = vunpack.c.h.b16 %v424
      %v1162 = vunpack.c.l.b16 %v425
      %v1163 = vunpack.c.h.b16 %v425
      %v1164 = vunpack.c.l.b16 %v426
      %v1165 = vunpack.c.h.b16 %v426
      %v1166 = vunpack.c.l.b16 %v427
      %v1167 = vunpack.c.h.b16 %v427
      %v1168 = vunpack.c.l.b16 %v428
      %v1169 = vunpack.c.h.b16 %v428
      %v1170 = vunpack.c.l.b16 %v429
      %v1171 = vunpack.c.h.b16 %v429
      %v1172 = vunpack.c.l.b16 %v430
      %v1173 = vunpack.c.h.b16 %v430
      %v1174 = vunpack.c.l.b16 %v431
      %v1175 = vunpack.c.h.b16 %v431
      %v1176 = vpack.c.b16 %v732, %v728
      %v1177 = vpack.c.b16 %v733, %v729
      %v1178 = vpack.c.b16 %v734, %v730
      %v1179 = vpack.c.b16 %v735, %v731
      %v1180 = vpack.c.b16 %v740, %v736
      %v1181 = vpack.c.b16 %v741, %v737
      %v1182 = vpack.c.b16 %v742, %v738
      %v1183 = vpack.c.b16 %v743, %v739
      %v1184 = vpack.c.b16 %v748, %v744
      %v1185 = vpack.c.b16 %v749, %v745
      %v1186 = vpack.c.b16 %v750, %v746
      %v1187 = vpack.c.b16 %v751, %v747
      %v1188 = vpack.c.b16 %v756, %v752
      %v1189 = vpack.c.b16 %v757, %v753
      %v1190 = vpack.c.b16 %v758, %v754
      %v1191 = vpack.c.b16 %v759, %v755
      %v1192 = vpack.c.b16 %v764, %v760
      %v1193 = vpack.c.b16 %v765, %v761
      %v1194 = vpack.c.b16 %v766, %v762
      %v1195 = vpack.c.b16 %v767, %v763
      %v1196 = vpack.c.b16 %v772, %v768
      %v1197 = vpack.c.b16 %v773, %v769
      %v1198 = vpack.c.b16 %v774, %v770
      %v1199 = vpack.c.b16 %v775, %v771
      %v1200 = vpack.c.b16 %v780, %v776
      %v1201 = vpack.c.b16 %v781, %v777
      %v1202 = vpack.c.b16 %v782, %v778
      %v1203 = vpack.c.b16 %v783, %v779
      %v1204 = vpack.c.b16 %v788, %v784
      %v1205 = vpack.c.b16 %v789, %v785
      %v1206 = vpack.c.b16 %v790, %v786
      %v1207 = vpack.c.b16 %v791, %v787
      %v1208 = vpack.c.b16 %v796, %v792
      %v1209 = vpack.c.b16 %v797, %v793
      %v1210 = vpack.c.b16 %v798, %v794
      %v1211 = vpack.c.b16 %v799, %v795
      %v1212 = vpack.c.b16 %v804, %v800
      %v1213 = vpack.c.b16 %v805, %v801
      %v1214 = vpack.c.b16 %v806, %v802
      %v1215 = vpack.c.b16 %v807, %v803
      %v1216 = vpack.c.b16 %v812, %v808
      %v1217 = vpack.c.b16 %v813, %v809
      %v1218 = vpack.c.b16 %v814, %v810
      %v1219 = vpack.c.b16 %v815, %v811
      %v1220 = vpack.c.b16 %v820, %v816
      %v1221 = vpack.c.b16 %v821, %v817
      %v1222 = vpack.c.b16 %v822, %v818
      %v1223 = vpack.c.b16 %v823, %v819
      %v1224 = vpack.c.b16 %v828, %v824
      %v1225 = vpack.c.b16 %v829, %v825
      %v1226 = vpack.c.b16 %v830, %v826
      %v1227 = vpack.c.b16 %v831, %v827
      %v1228 = vpack.c.b16 %v836, %v832
      %v1229 = vpack.c.b16 %v837, %v833
      %v1230 = vpack.c.b16 %v838, %v834
      %v1231 = vpack.c.b16 %v839, %v835
      %v1232 = vpack.c.b16 %v844, %v840
      %v1233 = vpack.c.b16 %v845, %v841
      %v1234 = vpack.c.b16 %v846, %v842
      %v1235 = vpack.c.b16 %v847, %v843
      %v1236 = vpack.c.b16 %v852, %v848
      %v1237 = vpack.c.b16 %v853, %v849
      %v1238 = vpack.c.b16 %v854, %v850
      %v1239 = vpack.c.b16 %v855, %v851
      %v1240 = vpack.c.b16 %v860, %v856
      %v1241 = vpack.c.b16 %v861, %v857
      %v1242 = vpack.c.b16 %v862, %v858
      %v1243 = vpack.c.b16 %v863, %v859
      %v1244 = vpack.c.b16 %v868, %v864
      %v1245 = vpack.c.b16 %v869, %v865
      %v1246 = vpack.c.b16 %v870, %v866
      %v1247 = vpack.c.b16 %v871, %v867
      %v1248 = vpack.c.b16 %v876, %v872
      %v1249 = vpack.c.b16 %v877, %v873
      %v1250 = vpack.c.b16 %v878, %v874
      %v1251 = vpack.c.b16 %v879, %v875
      %v1252 = vpack.c.b16 %v884, %v880
      %v1253 = vpack.c.b16 %v885, %v881
      %v1254 = vpack.c.b16 %v886, %v882
      %v1255 = vpack.c.b16 %v887, %v883
      %v1256 = vpack.c.b16 %v892, %v888
      %v1257 = vpack.c.b16 %v893, %v889
      %v1258 = vpack.c.b16 %v894, %v890
      %v1259 = vpack.c.b16 %v895, %v891
      %v1260 = vpack.c.b16 %v900, %v896
      %v1261 = vpack.c.b16 %v901, %v897
      %v1262 = vpack.c.b16 %v902, %v898
      %v1263 = vpack.c.b16 %v903, %v899
      %v1264 = vpack.c.b16 %v908, %v904
      %v1265 = vpack.c.b16 %v909, %v905
      %v1266 = vpack.c.b16 %v910, %v906
      %v1267 = vpack.c.b16 %v911, %v907
      %v1268 = vpack.c.b16 %v916, %v912
      %v1269 = vpack.c.b16 %v917, %v913
      %v1270 = vpack.c.b16 %v918, %v914
      %v1271 = vpack.c.b16 %v919, %v915
      %v1272 = vpack.c.b16 %v924, %v920
      %v1273 = vpack.c.b16 %v925, %v921
      %v1274 = vpack.c.b16 %v926, %v922
      %v1275 = vpack.c.b16 %v927, %v923
      %v1276 = vpack.c.b16 %v932, %v928
      %v1277 = vpack.c.b16 %v933, %v929
      %v1278 = vpack.c.b16 %v934, %v930
      %v1279 = vpack.c.b16 %v935, %v931
      %v1280 = vpack.c.b16 %v940, %v936
      %v1281 = vpack.c.b16 %v941, %v937
      %v1282 = vpack.c.b16 %v942, %v938
      %v1283 = vpack.c.b16 %v943, %v939
      %v1284 = vpack.c.b16 %v948, %v944
      %v1285 = vpack.c.b16 %v949, %v945
      %v1286 = vpack.c.b16 %v950, %v946
      %v1287 = vpack.c.b16 %v951, %v947
      %v1288 = vpack.c.b16 %v956, %v952
      %v1289 = vpack.c.b16 %v957, %v953
      %v1290 = vpack.c.b16 %v958, %v954
      %v1291 = vpack.c.b16 %v959, %v955
      %v1292 = vpack.c.b16 %v964, %v960
      %v1293 = vpack.c.b16 %v965, %v961
      %v1294 = vpack.c.b16 %v966, %v962
      %v1295 = vpack.c.b16 %v967, %v963
      %v1296 = vpack.c.b16 %v972, %v968
      %v1297 = vpack.c.b16 %v973, %v969
      %v1298 = vpack.c.b16 %v974, %v970
      %v1299 = vpack.c.b16 %v975, %v971
      %v1300 = vpack.c.b16 %v980, %v976
      %v1301 = vpack.c.b16 %v981, %v977
      %v1302 = vpack.c.b16 %v982, %v978
      %v1303 = vpack.c.b16 %v983, %v979
      %v1304 = vpack.c.b16 %v988, %v984
      %v1305 = vpack.c.b16 %v989, %v985
      %v1306 = vpack.c.b16 %v990, %v986
      %v1307 = vpack.c.b16 %v991, %v987
      %v1308 = vpack.c.b16 %v996, %v992
      %v1309 = vpack.c.b16 %v997, %v993
      %v1310 = vpack.c.b16 %v998, %v994
      %v1311 = vpack.c.b16 %v999, %v995
      %v1312 = vpack.c.b16 %v1004, %v1000
      %v1313 = vpack.c.b16 %v1005, %v1001
      %v1314 = vpack.c.b16 %v1006, %v1002
      %v1315 = vpack.c.b16 %v1007, %v1003
      %v1316 = vpack.c.b16 %v1012, %v1008
      %v1317 = vpack.c.b16 %v1013, %v1009
      %v1318 = vpack.c.b16 %v1014, %v1010
      %v1319 = vpack.c.b16 %v1015, %v1011
      %v1320 = vpack.c.b16 %v1020, %v1016
      %v1321 = vpack.c.b16 %v1021, %v1017
      %v1322 = vpack.c.b16 %v1022, %v1018
      %v1323 = vpack.c.b16 %v1023, %v1019
      %v1324 = vpack.c.b16 %v1028, %v1024
      %v1325 = vpack.c.b16 %v1029, %v1025
      %v1326 = vpack.c.b16 %v1030, %v1026
      %v1327 = vpack.c.b16 %v1031, %v1027
      %v1328 = vpack.c.b16 %v1036, %v1032
      %v1329 = vpack.c.b16 %v1037, %v1033
      %v1330 = vpack.c.b16 %v1038, %v1034
      %v1331 = vpack.c.b16 %v1039, %v1035
      %v1332 = vpack.c.b16 %v1044, %v1040
      %v1333 = vpack.c.b16 %v1045, %v1041
      %v1334 = vpack.c.b16 %v1046, %v1042
      %v1335 = vpack.c.b16 %v1047, %v1043
      %v1336 = vpack.c.b16 %v1052, %v1048
      %v1337 = vpack.c.b16 %v1053, %v1049
      %v1338 = vpack.c.b16 %v1054, %v1050
      %v1339 = vpack.c.b16 %v1055, %v1051
      %v1340 = vpack.c.b16 %v1060, %v1056
      %v1341 = vpack.c.b16 %v1061, %v1057
      %v1342 = vpack.c.b16 %v1062, %v1058
      %v1343 = vpack.c.b16 %v1063, %v1059
      %v1344 = vpack.c.b16 %v1068, %v1064
      %v1345 = vpack.c.b16 %v1069, %v1065
      %v1346 = vpack.c.b16 %v1070, %v1066
      %v1347 = vpack.c.b16 %v1071, %v1067
      %v1348 = vpack.c.b16 %v1076, %v1072
      %v1349 = vpack.c.b16 %v1077, %v1073
      %v1350 = vpack.c.b16 %v1078, %v1074
      %v1351 = vpack.c.b16 %v1079, %v1075
      %v1352 = vpack.c.b16 %v1084, %v1080
      %v1353 = vpack.c.b16 %v1085, %v1081
      %v1354 = vpack.c.b16 %v1086, %v1082
      %v1355 = vpack.c.b16 %v1087, %v1083
      %v1356 = vpack.c.b16 %v1092, %v1088
      %v1357 = vpack.c.b16 %v1093, %v1089
      %v1358 = vpack.c.b16 %v1094, %v1090
      %v1359 = vpack.c.b16 %v1095, %v1091
      %v1360 = vpack.c.b16 %v1100, %v1096
      %v1361 = vpack.c.b16 %v1101, %v1097
      %v1362 = vpack.c.b16 %v1102, %v1098
      %v1363 = vpack.c.b16 %v1103, %v1099
      %v1364 = vpack.c.b16 %v1108, %v1104
      %v1365 = vpack.c.b16 %v1109, %v1105
      %v1366 = vpack.c.b16 %v1110, %v1106
      %v1367 = vpack.c.b16 %v1111, %v1107
      %v1368 = vpack.c.b16 %v1116, %v1112
      %v1369 = vpack.c.b16 %v1117, %v1113
      %v1370 = vpack.c.b16 %v1118, %v1114
      %v1371 = vpack.c.b16 %v1119, %v1115
      %v1372 = vpack.c.b16 %v1124, %v1120
      %v1373 = vpack.c.b16 %v1125, %v1121
      %v1374 = vpack.c.b16 %v1126, %v1122
      %v1375 = vpack.c.b16 %v1127, %v1123
      %v1376 = vpack.c.b16 %v1132, %v1128
      %v1377 = vpack.c.b16 %v1133, %v1129
      %v1378 = vpack.c.b16 %v1134, %v1130
      %v1379 = vpack.c.b16 %v1135, %v1131
      %v1380 = vpack.c.b16 %v1140, %v1136
      %v1381 = vpack.c.b16 %v1141, %v1137
      %v1382 = vpack.c.b16 %v1142, %v1138
      %v1383 = vpack.c.b16 %v1143, %v1139
      %v1384 = vpack.c.b16 %v1148, %v1144
      %v1385 = vpack.c.b16 %v1149, %v1145
      %v1386 = vpack.c.b16 %v1150, %v1146
      %v1387 = vpack.c.b16 %v1151, %v1147
      %v1388 = vpack.c.b16 %v1156, %v1152
      %v1389 = vpack.c.b16 %v1157, %v1153
      %v1390 = vpack.c.b16 %v1158, %v1154
      %v1391 = vpack.c.b16 %v1159, %v1155
      %v1392 = vpack.c.b16 %v1164, %v1160
      %v1393 = vpack.c.b16 %v1165, %v1161
      %v1394 = vpack.c.b16 %v1166, %v1162
      %v1395 = vpack.c.b16 %v1167, %v1163
      %v1396 = vpack.c.b16 %v1172, %v1168
      %v1397 = vpack.c.b16 %v1173, %v1169
      %v1398 = vpack.c.b16 %v1174, %v1170
      %v1399 = vpack.c.b16 %v1175, %v1171
      %1624 = vmatprep.subr.bf16.mxu0 %v1205
      %1625 = vmatpush1.bf16.msra.mxu0 %v1204
      %1626 = vmatprep.subr.bf16.mxu0 %v1201
      %1627 = vmatpush1.bf16.msra.mxu0 %v1200
      %1628 = vmatprep.subr.bf16.mxu0 %v1197
      %1629 = vmatpush1.bf16.msra.mxu0 %v1196
      %1630 = vmatprep.subr.bf16.mxu0 %v1193
      %1631 = vmatpush1.bf16.msra.mxu0 %v1192
      %1632 = vmatprep.subr.bf16.mxu0 %v1189
      %1633 = vmatpush1.bf16.msra.mxu0 %v1188
      %1634 = vmatprep.subr.bf16.mxu0 %v1185
      %1635 = vmatpush1.bf16.msra.mxu0 %v1184
      %1636 = vmatprep.subr.bf16.mxu0 %v1181
      %1637 = vmatpush1.bf16.msra.mxu0 %v1180
      %1638 = vmatprep.subr.bf16.mxu0 %v1177
      %1639 = vmatpush1.bf16.msra.mxu0 %v1176
      %1640 = vmatprep.subr.bf16.mxu0 %v1237
      %1641 = vmatpush2.bf16.msra.mxu0 %v1236
      %1642 = vmatprep.subr.bf16.mxu0 %v1233
      %1643 = vmatpush2.bf16.msra.mxu0 %v1232
      %1644 = vmatprep.subr.bf16.mxu0 %v1229
      %1645 = vmatpush2.bf16.msra.mxu0 %v1228
      %1646 = vmatprep.subr.bf16.mxu0 %v1225
      %1647 = vmatpush2.bf16.msra.mxu0 %v1224
      %1648 = vmatprep.subr.bf16.mxu0 %v1221
      %1649 = vmatpush2.bf16.msra.mxu0 %v1220
      %1650 = vmatprep.subr.bf16.mxu0 %v1217
      %1651 = vmatpush2.bf16.msra.mxu0 %v1216
      %1652 = vmatprep.subr.bf16.mxu0 %v1213
      %1653 = vmatpush2.bf16.msra.mxu0 %v1212
      %1654 = vmatprep.subr.bf16.mxu0 %v1209
      %1655 = vmatpush2.bf16.msra.mxu0 %v1208
      %1656 = vmatprep.mubr.bf16.mxu0 %v477
      %1657 = vmatmul.mubr.bf16.gmra.mxu0 %v476
      %v1658 = vpop.f32.mrf.mxu0
      %v1659 = vadd.f32 0.0, %v1658
      %v1660 = vpop.f32.mrf.mxu0
      %v1661 = vadd.f32 0.0, %v1660
      %v1662 = vpop.f32.mrf.mxu0
      %v1663 = vadd.f32 0.0, %v1662
      %v1664 = vpop.f32.mrf.mxu0
      %v1665 = vadd.f32 0.0, %v1664
      %1666 = vmatprep.mubr.bf16.mxu0 %v484
      %1667 = vmatmul.mubr.bf16.gmra.mxu0 %v483
      %v1668 = vpop.f32.mrf.mxu0
      %v1669 = vadd.f32 0.0, %v1668
      %v1670 = vpop.f32.mrf.mxu0
      %v1671 = vadd.f32 0.0, %v1670
      %v1672 = vpop.f32.mrf.mxu0
      %v1673 = vadd.f32 0.0, %v1672
      %v1674 = vpop.f32.mrf.mxu0
      %v1675 = vadd.f32 0.0, %v1674
      %1676 = vdwg.mxu0
      %1677 = vmatprep.subr.bf16.mxu0 %v1269
      %1678 = vmatpush1.bf16.msra.mxu0 %v1268
      %1679 = vmatprep.subr.bf16.mxu0 %v1265
      %1680 = vmatpush1.bf16.msra.mxu0 %v1264
      %1681 = vmatprep.subr.bf16.mxu0 %v1261
      %1682 = vmatpush1.bf16.msra.mxu0 %v1260
      %1683 = vmatprep.subr.bf16.mxu0 %v1257
      %1684 = vmatpush1.bf16.msra.mxu0 %v1256
      %1685 = vmatprep.subr.bf16.mxu0 %v1253
      %1686 = vmatpush1.bf16.msra.mxu0 %v1252
      %1687 = vmatprep.subr.bf16.mxu0 %v1249
      %1688 = vmatpush1.bf16.msra.mxu0 %v1248
      %1689 = vmatprep.subr.bf16.mxu0 %v1245
      %1690 = vmatpush1.bf16.msra.mxu0 %v1244
      %1691 = vmatprep.subr.bf16.mxu0 %v1241
      %1692 = vmatpush1.bf16.msra.mxu0 %v1240
      %1693 = vmatprep.subr.bf16.mxu0 %v1301
      %1694 = vmatpush2.bf16.msra.mxu0 %v1300
      %1695 = vmatprep.subr.bf16.mxu0 %v1297
      %1696 = vmatpush2.bf16.msra.mxu0 %v1296
      %1697 = vmatprep.subr.bf16.mxu0 %v1293
      %1698 = vmatpush2.bf16.msra.mxu0 %v1292
      %1699 = vmatprep.subr.bf16.mxu0 %v1289
      %1700 = vmatpush2.bf16.msra.mxu0 %v1288
      %1701 = vmatprep.subr.bf16.mxu0 %v1285
      %1702 = vmatpush2.bf16.msra.mxu0 %v1284
      %1703 = vmatprep.subr.bf16.mxu0 %v1281
      %1704 = vmatpush2.bf16.msra.mxu0 %v1280
      %1705 = vmatprep.subr.bf16.mxu0 %v1277
      %1706 = vmatpush2.bf16.msra.mxu0 %v1276
      %1707 = vmatprep.subr.bf16.mxu0 %v1273
      %1708 = vmatpush2.bf16.msra.mxu0 %v1272
      %1709 = vmatprep.mubr.bf16.mxu0 %v479
      %1710 = vmatmul.mubr.bf16.gmra.mxu0 %v478
      %v1711 = vpop.f32.mrf.mxu0
      %v1712 = vadd.f32 %v1659, %v1711
      %v1713 = vpop.f32.mrf.mxu0
      %v1714 = vadd.f32 %v1661, %v1713
      %v1715 = vpop.f32.mrf.mxu0
      %v1716 = vadd.f32 %v1663, %v1715
      %v1717 = vpop.f32.mrf.mxu0
      %v1718 = vadd.f32 %v1665, %v1717
      %1719 = vmatprep.mubr.bf16.mxu0 %v486
      %1720 = vmatmul.mubr.bf16.gmra.mxu0 %v485
      %v1721 = vpop.f32.mrf.mxu0
      %v1722 = vadd.f32 %v1669, %v1721
      %v1723 = vpop.f32.mrf.mxu0
      %v1724 = vadd.f32 %v1671, %v1723
      %v1725 = vpop.f32.mrf.mxu0
      %v1726 = vadd.f32 %v1673, %v1725
      %v1727 = vpop.f32.mrf.mxu0
      %v1728 = vadd.f32 %v1675, %v1727
      %1729 = vdwg.mxu0
      %1730 = vmatprep.subr.bf16.mxu0 %v1333
      %1731 = vmatpush1.bf16.msra.mxu0 %v1332
      %1732 = vmatprep.subr.bf16.mxu0 %v1329
      %1733 = vmatpush1.bf16.msra.mxu0 %v1328
      %1734 = vmatprep.subr.bf16.mxu0 %v1325
      %1735 = vmatpush1.bf16.msra.mxu0 %v1324
      %1736 = vmatprep.subr.bf16.mxu0 %v1321
      %1737 = vmatpush1.bf16.msra.mxu0 %v1320
      %1738 = vmatprep.subr.bf16.mxu0 %v1317
      %1739 = vmatpush1.bf16.msra.mxu0 %v1316
      %1740 = vmatprep.subr.bf16.mxu0 %v1313
      %1741 = vmatpush1.bf16.msra.mxu0 %v1312
      %1742 = vmatprep.subr.bf16.mxu0 %v1309
      %1743 = vmatpush1.bf16.msra.mxu0 %v1308
      %1744 = vmatprep.subr.bf16.mxu0 %v1305
      %1745 = vmatpush1.bf16.msra.mxu0 %v1304
      %1746 = vmatprep.subr.bf16.mxu0 %v1365
      %1747 = vmatpush2.bf16.msra.mxu0 %v1364
      %1748 = vmatprep.subr.bf16.mxu0 %v1361
      %1749 = vmatpush2.bf16.msra.mxu0 %v1360
      %1750 = vmatprep.subr.bf16.mxu0 %v1357
      %1751 = vmatpush2.bf16.msra.mxu0 %v1356
      %1752 = vmatprep.subr.bf16.mxu0 %v1353
      %1753 = vmatpush2.bf16.msra.mxu0 %v1352
      %1754 = vmatprep.subr.bf16.mxu0 %v1349
      %1755 = vmatpush2.bf16.msra.mxu0 %v1348
      %1756 = vmatprep.subr.bf16.mxu0 %v1345
      %1757 = vmatpush2.bf16.msra.mxu0 %v1344
      %1758 = vmatprep.subr.bf16.mxu0 %v1341
      %1759 = vmatpush2.bf16.msra.mxu0 %v1340
      %1760 = vmatprep.subr.bf16.mxu0 %v1337
      %1761 = vmatpush2.bf16.msra.mxu0 %v1336
      %1762 = vmatprep.mubr.bf16.mxu0 %v481
      %1763 = vmatmul.mubr.bf16.gmra.mxu0 %v480
      %v1764 = vpop.f32.mrf.mxu0
      %v1765 = vadd.f32 %v1712, %v1764
      %v1766 = vpop.f32.mrf.mxu0
      %v1767 = vadd.f32 %v1714, %v1766
      %v1768 = vpop.f32.mrf.mxu0
      %v1769 = vadd.f32 %v1716, %v1768
      %v1770 = vpop.f32.mrf.mxu0
      %v1771 = vadd.f32 %v1718, %v1770
      %1772 = vmatprep.mubr.bf16.mxu0 %v488
      %1773 = vmatmul.mubr.bf16.gmra.mxu0 %v487
      %v1774 = vpop.f32.mrf.mxu0
      %v1775 = vadd.f32 %v1722, %v1774
      %v1776 = vpop.f32.mrf.mxu0
      %v1777 = vadd.f32 %v1724, %v1776
      %v1778 = vpop.f32.mrf.mxu0
      %v1779 = vadd.f32 %v1726, %v1778
      %v1780 = vpop.f32.mrf.mxu0
      %v1781 = vadd.f32 %v1728, %v1780
      %1782 = vdwg.mxu0
      %1783 = vmatprep.subr.bf16.mxu0 %v1397
      %1784 = vmatpush1.bf16.msra.mxu0 %v1396
      %1785 = vmatprep.subr.bf16.mxu0 %v1393
      %1786 = vmatpush1.bf16.msra.mxu0 %v1392
      %1787 = vmatprep.subr.bf16.mxu0 %v1389
      %1788 = vmatpush1.bf16.msra.mxu0 %v1388
      %1789 = vmatprep.subr.bf16.mxu0 %v1385
      %1790 = vmatpush1.bf16.msra.mxu0 %v1384
      %1791 = vmatprep.subr.bf16.mxu0 %v1381
      %1792 = vmatpush1.bf16.msra.mxu0 %v1380
      %1793 = vmatprep.subr.bf16.mxu0 %v1377
      %1794 = vmatpush1.bf16.msra.mxu0 %v1376
      %1795 = vmatprep.subr.bf16.mxu0 %v1373
      %1796 = vmatpush1.bf16.msra.mxu0 %v1372
      %1797 = vmatprep.subr.bf16.mxu0 %v1369
      %1798 = vmatpush1.bf16.msra.mxu0 %v1368
      %1799 = vmatprep.subr.bf16.mxu0 0
      %1800 = vmatpush2.bf16.msra.mxu0 0
      %1801 = vmatprep.subr.bf16.mxu0 0
      %1802 = vmatpush2.bf16.msra.mxu0 0
      %1803 = vmatprep.subr.bf16.mxu0 0
      %1804 = vmatpush2.bf16.msra.mxu0 0
      %1805 = vmatprep.subr.bf16.mxu0 0
      %1806 = vmatpush2.bf16.msra.mxu0 0
      %1807 = vmatprep.subr.bf16.mxu0 0
      %1808 = vmatpush2.bf16.msra.mxu0 0
      %1809 = vmatprep.subr.bf16.mxu0 0
      %1810 = vmatpush2.bf16.msra.mxu0 0
      %1811 = vmatprep.subr.bf16.mxu0 0
      %1812 = vmatpush2.bf16.msra.mxu0 0
      %1813 = vmatprep.subr.bf16.mxu0 0
      %1814 = vmatpush2.bf16.msra.mxu0 0
      %1815 = vmatprep.mubr.bf16.mxu0 0
      %1816 = vmatmul.mubr.bf16.gmra.mxu0 %v482
      %v1817 = vpop.f32.mrf.mxu0
      %v1818 = vadd.f32 %v1765, %v1817
      %v1819 = vpop.f32.mrf.mxu0
      %v1820 = vadd.f32 %v1767, %v1819
      %v1821 = vpop.f32.mrf.mxu0
      %v1822 = vadd.f32 %v1769, %v1821
      %v1823 = vpop.f32.mrf.mxu0
      %v1824 = vadd.f32 %v1771, %v1823
      %1825 = vmatprep.mubr.bf16.mxu0 0
      %1826 = vmatmul.mubr.bf16.gmra.mxu0 %v489
      %v1827 = vpop.f32.mrf.mxu0
      %v1828 = vadd.f32 %v1775, %v1827
      %v1829 = vpop.f32.mrf.mxu0
      %v1830 = vadd.f32 %v1777, %v1829
      %v1831 = vpop.f32.mrf.mxu0
      %v1832 = vadd.f32 %v1779, %v1831
      %v1833 = vpop.f32.mrf.mxu0
      %v1834 = vadd.f32 %v1781, %v1833
      %1835 = vdwg.mxu0
      %1836 = vmatprep.subr.bf16.mxu0 %v1207
      %1837 = vmatpush1.bf16.msra.mxu0 %v1206
      %1838 = vmatprep.subr.bf16.mxu0 %v1203
      %1839 = vmatpush1.bf16.msra.mxu0 %v1202
      %1840 = vmatprep.subr.bf16.mxu0 %v1199
      %1841 = vmatpush1.bf16.msra.mxu0 %v1198
      %1842 = vmatprep.subr.bf16.mxu0 %v1195
      %1843 = vmatpush1.bf16.msra.mxu0 %v1194
      %1844 = vmatprep.subr.bf16.mxu0 %v1191
      %1845 = vmatpush1.bf16.msra.mxu0 %v1190
      %1846 = vmatprep.subr.bf16.mxu0 %v1187
      %1847 = vmatpush1.bf16.msra.mxu0 %v1186
      %1848 = vmatprep.subr.bf16.mxu0 %v1183
      %1849 = vmatpush1.bf16.msra.mxu0 %v1182
      %1850 = vmatprep.subr.bf16.mxu0 %v1179
      %1851 = vmatpush1.bf16.msra.mxu0 %v1178
      %1852 = vmatprep.subr.bf16.mxu0 %v1239
      %1853 = vmatpush2.bf16.msra.mxu0 %v1238
      %1854 = vmatprep.subr.bf16.mxu0 %v1235
      %1855 = vmatpush2.bf16.msra.mxu0 %v1234
      %1856 = vmatprep.subr.bf16.mxu0 %v1231
      %1857 = vmatpush2.bf16.msra.mxu0 %v1230
      %1858 = vmatprep.subr.bf16.mxu0 %v1227
      %1859 = vmatpush2.bf16.msra.mxu0 %v1226
      %1860 = vmatprep.subr.bf16.mxu0 %v1223
      %1861 = vmatpush2.bf16.msra.mxu0 %v1222
      %1862 = vmatprep.subr.bf16.mxu0 %v1219
      %1863 = vmatpush2.bf16.msra.mxu0 %v1218
      %1864 = vmatprep.subr.bf16.mxu0 %v1215
      %1865 = vmatpush2.bf16.msra.mxu0 %v1214
      %1866 = vmatprep.subr.bf16.mxu0 %v1211
      %1867 = vmatpush2.bf16.msra.mxu0 %v1210
      %1868 = vmatprep.mubr.bf16.mxu0 %v477
      %1869 = vmatmul.mubr.bf16.gmra.mxu0 %v476
      %v1870 = vpop.f32.mrf.mxu0
      %v1871 = vadd.f32 0.0, %v1870
      %v1872 = vpop.f32.mrf.mxu0
      %v1873 = vadd.f32 0.0, %v1872
      %v1874 = vpop.f32.mrf.mxu0
      %v1875 = vadd.f32 0.0, %v1874
      %v1876 = vpop.f32.mrf.mxu0
      %v1877 = vadd.f32 0.0, %v1876
      %1878 = vmatprep.mubr.bf16.mxu0 %v484
      %1879 = vmatmul.mubr.bf16.gmra.mxu0 %v483
      %v1880 = vpop.f32.mrf.mxu0
      %v1881 = vadd.f32 0.0, %v1880
      %v1882 = vpop.f32.mrf.mxu0
      %v1883 = vadd.f32 0.0, %v1882
      %v1884 = vpop.f32.mrf.mxu0
      %v1885 = vadd.f32 0.0, %v1884
      %v1886 = vpop.f32.mrf.mxu0
      %v1887 = vadd.f32 0.0, %v1886
      %1888 = vdwg.mxu0
      %1889 = vmatprep.subr.bf16.mxu0 %v1271
      %1890 = vmatpush1.bf16.msra.mxu0 %v1270
      %1891 = vmatprep.subr.bf16.mxu0 %v1267
      %1892 = vmatpush1.bf16.msra.mxu0 %v1266
      %1893 = vmatprep.subr.bf16.mxu0 %v1263
      %1894 = vmatpush1.bf16.msra.mxu0 %v1262
      %1895 = vmatprep.subr.bf16.mxu0 %v1259
      %1896 = vmatpush1.bf16.msra.mxu0 %v1258
      %1897 = vmatprep.subr.bf16.mxu0 %v1255
      %1898 = vmatpush1.bf16.msra.mxu0 %v1254
      %1899 = vmatprep.subr.bf16.mxu0 %v1251
      %1900 = vmatpush1.bf16.msra.mxu0 %v1250
      %1901 = vmatprep.subr.bf16.mxu0 %v1247
      %1902 = vmatpush1.bf16.msra.mxu0 %v1246
      %1903 = vmatprep.subr.bf16.mxu0 %v1243
      %1904 = vmatpush1.bf16.msra.mxu0 %v1242
      %1905 = vmatprep.subr.bf16.mxu0 %v1303
      %1906 = vmatpush2.bf16.msra.mxu0 %v1302
      %1907 = vmatprep.subr.bf16.mxu0 %v1299
      %1908 = vmatpush2.bf16.msra.mxu0 %v1298
      %1909 = vmatprep.subr.bf16.mxu0 %v1295
      %1910 = vmatpush2.bf16.msra.mxu0 %v1294
      %1911 = vmatprep.subr.bf16.mxu0 %v1291
      %1912 = vmatpush2.bf16.msra.mxu0 %v1290
      %1913 = vmatprep.subr.bf16.mxu0 %v1287
      %1914 = vmatpush2.bf16.msra.mxu0 %v1286
      %1915 = vmatprep.subr.bf16.mxu0 %v1283
      %1916 = vmatpush2.bf16.msra.mxu0 %v1282
      %1917 = vmatprep.subr.bf16.mxu0 %v1279
      %1918 = vmatpush2.bf16.msra.mxu0 %v1278
      %1919 = vmatprep.subr.bf16.mxu0 %v1275
      %1920 = vmatpush2.bf16.msra.mxu0 %v1274
      %1921 = vmatprep.mubr.bf16.mxu0 %v479
      %1922 = vmatmul.mubr.bf16.gmra.mxu0 %v478
      %v1923 = vpop.f32.mrf.mxu0
      %v1924 = vadd.f32 %v1871, %v1923
      %v1925 = vpop.f32.mrf.mxu0
      %v1926 = vadd.f32 %v1873, %v1925
      %v1927 = vpop.f32.mrf.mxu0
      %v1928 = vadd.f32 %v1875, %v1927
      %v1929 = vpop.f32.mrf.mxu0
      %v1930 = vadd.f32 %v1877, %v1929
      %1931 = vmatprep.mubr.bf16.mxu0 %v486
      %1932 = vmatmul.mubr.bf16.gmra.mxu0 %v485
      %v1933 = vpop.f32.mrf.mxu0
      %v1934 = vadd.f32 %v1881, %v1933
      %v1935 = vpop.f32.mrf.mxu0
      %v1936 = vadd.f32 %v1883, %v1935
      %v1937 = vpop.f32.mrf.mxu0
      %v1938 = vadd.f32 %v1885, %v1937
      %v1939 = vpop.f32.mrf.mxu0
      %v1940 = vadd.f32 %v1887, %v1939
      %1941 = vdwg.mxu0
      %1942 = vmatprep.subr.bf16.mxu0 %v1335
      %1943 = vmatpush1.bf16.msra.mxu0 %v1334
      %1944 = vmatprep.subr.bf16.mxu0 %v1331
      %1945 = vmatpush1.bf16.msra.mxu0 %v1330
      %1946 = vmatprep.subr.bf16.mxu0 %v1327
      %1947 = vmatpush1.bf16.msra.mxu0 %v1326
      %1948 = vmatprep.subr.bf16.mxu0 %v1323
      %1949 = vmatpush1.bf16.msra.mxu0 %v1322
      %1950 = vmatprep.subr.bf16.mxu0 %v1319
      %1951 = vmatpush1.bf16.msra.mxu0 %v1318
      %1952 = vmatprep.subr.bf16.mxu0 %v1315
      %1953 = vmatpush1.bf16.msra.mxu0 %v1314
      %1954 = vmatprep.subr.bf16.mxu0 %v1311
      %1955 = vmatpush1.bf16.msra.mxu0 %v1310
      %1956 = vmatprep.subr.bf16.mxu0 %v1307
      %1957 = vmatpush1.bf16.msra.mxu0 %v1306
      %1958 = vmatprep.subr.bf16.mxu0 %v1367
      %1959 = vmatpush2.bf16.msra.mxu0 %v1366
      %1960 = vmatprep.subr.bf16.mxu0 %v1363
      %1961 = vmatpush2.bf16.msra.mxu0 %v1362
      %1962 = vmatprep.subr.bf16.mxu0 %v1359
      %1963 = vmatpush2.bf16.msra.mxu0 %v1358
      %1964 = vmatprep.subr.bf16.mxu0 %v1355
      %1965 = vmatpush2.bf16.msra.mxu0 %v1354
      %1966 = vmatprep.subr.bf16.mxu0 %v1351
      %1967 = vmatpush2.bf16.msra.mxu0 %v1350
      %1968 = vmatprep.subr.bf16.mxu0 %v1347
      %1969 = vmatpush2.bf16.msra.mxu0 %v1346
      %1970 = vmatprep.subr.bf16.mxu0 %v1343
      %1971 = vmatpush2.bf16.msra.mxu0 %v1342
      %1972 = vmatprep.subr.bf16.mxu0 %v1339
      %1973 = vmatpush2.bf16.msra.mxu0 %v1338
      %1974 = vmatprep.mubr.bf16.mxu0 %v481
      %1975 = vmatmul.mubr.bf16.gmra.mxu0 %v480
      %v1976 = vpop.f32.mrf.mxu0
      %v1977 = vadd.f32 %v1924, %v1976
      %v1978 = vpop.f32.mrf.mxu0
      %v1979 = vadd.f32 %v1926, %v1978
      %v1980 = vpop.f32.mrf.mxu0
      %v1981 = vadd.f32 %v1928, %v1980
      %v1982 = vpop.f32.mrf.mxu0
      %v1983 = vadd.f32 %v1930, %v1982
      %1984 = vmatprep.mubr.bf16.mxu0 %v488
      %1985 = vmatmul.mubr.bf16.gmra.mxu0 %v487
      %v1986 = vpop.f32.mrf.mxu0
      %v1987 = vadd.f32 %v1934, %v1986
      %v1988 = vpop.f32.mrf.mxu0
      %v1989 = vadd.f32 %v1936, %v1988
      %v1990 = vpop.f32.mrf.mxu0
      %v1991 = vadd.f32 %v1938, %v1990
      %v1992 = vpop.f32.mrf.mxu0
      %v1993 = vadd.f32 %v1940, %v1992
      %1994 = vdwg.mxu0
      %1995 = vmatprep.subr.bf16.mxu0 %v1399
      %1996 = vmatpush1.bf16.msra.mxu0 %v1398
      %1997 = vmatprep.subr.bf16.mxu0 %v1395
      %1998 = vmatpush1.bf16.msra.mxu0 %v1394
      %1999 = vmatprep.subr.bf16.mxu0 %v1391
      %2000 = vmatpush1.bf16.msra.mxu0 %v1390
      %2001 = vmatprep.subr.bf16.mxu0 %v1387
      %2002 = vmatpush1.bf16.msra.mxu0 %v1386
      %2003 = vmatprep.subr.bf16.mxu0 %v1383
      %2004 = vmatpush1.bf16.msra.mxu0 %v1382
      %2005 = vmatprep.subr.bf16.mxu0 %v1379
      %2006 = vmatpush1.bf16.msra.mxu0 %v1378
      %2007 = vmatprep.subr.bf16.mxu0 %v1375
      %2008 = vmatpush1.bf16.msra.mxu0 %v1374
      %2009 = vmatprep.subr.bf16.mxu0 %v1371
      %2010 = vmatpush1.bf16.msra.mxu0 %v1370
      %2011 = vmatprep.subr.bf16.mxu0 0
      %2012 = vmatpush2.bf16.msra.mxu0 0
      %2013 = vmatprep.subr.bf16.mxu0 0
      %2014 = vmatpush2.bf16.msra.mxu0 0
      %2015 = vmatprep.subr.bf16.mxu0 0
      %2016 = vmatpush2.bf16.msra.mxu0 0
      %2017 = vmatprep.subr.bf16.mxu0 0
      %2018 = vmatpush2.bf16.msra.mxu0 0
      %2019 = vmatprep.subr.bf16.mxu0 0
      %2020 = vmatpush2.bf16.msra.mxu0 0
      %2021 = vmatprep.subr.bf16.mxu0 0
      %2022 = vmatpush2.bf16.msra.mxu0 0
      %2023 = vmatprep.subr.bf16.mxu0 0
      %2024 = vmatpush2.bf16.msra.mxu0 0
      %2025 = vmatprep.subr.bf16.mxu0 0
      %2026 = vmatpush2.bf16.msra.mxu0 0
      %2027 = vmatprep.mubr.bf16.mxu0 0
      %2028 = vmatmul.mubr.bf16.gmra.mxu0 %v482
      %v2029 = vpop.f32.mrf.mxu0
      %v2030 = vadd.f32 %v1977, %v2029
      %v2031 = vpop.f32.mrf.mxu0
      %v2032 = vadd.f32 %v1979, %v2031
      %v2033 = vpop.f32.mrf.mxu0
      %v2034 = vadd.f32 %v1981, %v2033
      %v2035 = vpop.f32.mrf.mxu0
      %v2036 = vadd.f32 %v1983, %v2035
      %2037 = vmatprep.mubr.bf16.mxu0 0
      %2038 = vmatmul.mubr.bf16.gmra.mxu0 %v489
      %v2039 = vpop.f32.mrf.mxu0
      %v2040 = vadd.f32 %v1987, %v2039
      %v2041 = vpop.f32.mrf.mxu0
      %v2042 = vadd.f32 %v1989, %v2041
      %v2043 = vpop.f32.mrf.mxu0
      %v2044 = vadd.f32 %v1991, %v2043
      %v2045 = vpop.f32.mrf.mxu0
      %v2046 = vadd.f32 %v1993, %v2045
      %2047 = vdwg.mxu0
      %v2048 = vadd.f32 %v1818, %v1820
      %v2049 = vadd.f32 %v2048, %v2030
      %v2050 = vadd.f32 %v2049, %v2032
      %2051 = vadd.xlane.f32.xlu0 %v2050
      %v2052 = vpop.xlane.xlu0 %2051
      %v2053 = vadd.f32 %v1822, %v1824
      %v2054 = vadd.f32 %v2053, %v2034
      %v2055 = vadd.f32 %v2054, %v2036
      %2056 = vadd.xlane.f32.xlu0 %v2055
      %v2057 = vpop.xlane.xlu0 %2056
      %v2058 = vadd.f32 %v1828, %v1830
      %v2059 = vadd.f32 %v2058, %v2040
      %v2060 = vadd.f32 %v2059, %v2042
      %2061 = vadd.xlane.f32.xlu0 %v2060
      %v2062 = vpop.xlane.xlu0 %2061
      %v2063 = vadd.f32 %v1832, %v1834
      %v2064 = vadd.f32 %v2063, %v2044
      %v2065 = vadd.f32 %v2064, %v2046
      %2066 = vadd.xlane.f32.xlu0 %v2065
      %v2067 = vpop.xlane.xlu0 %2066
      %v2068 = vrcp.pop 512.0
      %v2069 = vmul.f32 %v2052, %v2068
      %v2070 = vmul.f32 %v2057, %v2068
      %v2071 = vmul.f32 %v2062, %v2068
      %v2072 = vmul.f32 %v2067, %v2068
      %v2073 = vsub.f32 %v1818, %v2069
      %v2074 = vsub.f32 %v1820, %v2069
      %v2075 = vsub.f32 %v2030, %v2069
      %v2076 = vsub.f32 %v2032, %v2069
      %v2077 = vsub.f32 %v1822, %v2070
      %v2078 = vsub.f32 %v1824, %v2070
      %v2079 = vsub.f32 %v2034, %v2070
      %v2080 = vsub.f32 %v2036, %v2070
      %v2081 = vsub.f32 %v1828, %v2071
      %v2082 = vsub.f32 %v1830, %v2071
      %v2083 = vsub.f32 %v2040, %v2071
      %v2084 = vsub.f32 %v2042, %v2071
      %v2085 = vsub.f32 %v1832, %v2072
      %v2086 = vsub.f32 %v1834, %v2072
      %v2087 = vsub.f32 %v2044, %v2072
      %v2088 = vsub.f32 %v2046, %v2072
      %v2089 = vmul.f32 %v2073, %v2073
      %v2090 = vmul.f32 %v2074, %v2074
      %v2091 = vmul.f32 %v2075, %v2075
      %v2092 = vmul.f32 %v2076, %v2076
      %v2093 = vmul.f32 %v2077, %v2077
      %v2094 = vmul.f32 %v2078, %v2078
      %v2095 = vmul.f32 %v2079, %v2079
      %v2096 = vmul.f32 %v2080, %v2080
      %v2097 = vmul.f32 %v2081, %v2081
      %v2098 = vmul.f32 %v2082, %v2082
      %v2099 = vmul.f32 %v2083, %v2083
      %v2100 = vmul.f32 %v2084, %v2084
      %v2101 = vmul.f32 %v2085, %v2085
      %v2102 = vmul.f32 %v2086, %v2086
      %v2103 = vmul.f32 %v2087, %v2087
      %v2104 = vmul.f32 %v2088, %v2088
      %v2105 = vadd.f32 %v2089, %v2090
      %v2106 = vadd.f32 %v2105, %v2091
      %v2107 = vadd.f32 %v2106, %v2092
      %2108 = vadd.xlane.f32.xlu0 %v2107
      %v2109 = vpop.xlane.xlu0 %2108
      %v2110 = vadd.f32 %v2093, %v2094
      %v2111 = vadd.f32 %v2110, %v2095
      %v2112 = vadd.f32 %v2111, %v2096
      %2113 = vadd.xlane.f32.xlu0 %v2112
      %v2114 = vpop.xlane.xlu0 %2113
      %v2115 = vadd.f32 %v2097, %v2098
      %v2116 = vadd.f32 %v2115, %v2099
      %v2117 = vadd.f32 %v2116, %v2100
      %2118 = vadd.xlane.f32.xlu0 %v2117
      %v2119 = vpop.xlane.xlu0 %2118
      %v2120 = vadd.f32 %v2101, %v2102
      %v2121 = vadd.f32 %v2120, %v2103
      %v2122 = vadd.f32 %v2121, %v2104
      %2123 = vadd.xlane.f32.xlu0 %v2122
      %v2124 = vpop.xlane.xlu0 %2123
      %v2125 = vmul.f32 %v2109, %v2068
      %v2126 = vmul.f32 %v2114, %v2068
      %v2127 = vmul.f32 %v2119, %v2068
      %v2128 = vmul.f32 %v2124, %v2068
      %v2129 = vadd.f32 %v2125, 1e-05
      %v2130 = vadd.f32 %v2126, 1e-05
      %v2131 = vadd.f32 %v2127, 1e-05
      %v2132 = vadd.f32 %v2128, 1e-05
      %v2133 = vrsqrt.pop %v2129
      %v2134 = vrsqrt.pop %v2130
      %v2135 = vrsqrt.pop %v2131
      %v2136 = vrsqrt.pop %v2132
      %v2137 = vmul.f32 %v2073, %v2133
      %v2138 = vmul.f32 %v2074, %v2133
      %v2139 = vmul.f32 %v2075, %v2133
      %v2140 = vmul.f32 %v2076, %v2133
      %v2141 = vmul.f32 %v2077, %v2134
      %v2142 = vmul.f32 %v2078, %v2134
      %v2143 = vmul.f32 %v2079, %v2134
      %v2144 = vmul.f32 %v2080, %v2134
      %v2145 = vmul.f32 %v2081, %v2135
      %v2146 = vmul.f32 %v2082, %v2135
      %v2147 = vmul.f32 %v2083, %v2135
      %v2148 = vmul.f32 %v2084, %v2135
      %v2149 = vmul.f32 %v2085, %v2136
      %v2150 = vmul.f32 %v2086, %v2136
      %v2151 = vmul.f32 %v2087, %v2136
      %v2152 = vmul.f32 %v2088, %v2136
      %v2153 = vld [vmem:[%s185] sm:$0xff]
      %v2154 = vld [vmem:[%s185 + $0x8] sm:$0xff]
      %v2155 = vld [vmem:[%s185 + $0x10] sm:$0xff]
      %v2156 = vld [vmem:[%s185 + $0x18] sm:$0xff]
      %v2157 = vld [vmem:[%s185 + $0x20] sm:$0xff]
      %v2158 = vld [vmem:[%s185 + $0x28] sm:$0xff]
      %v2159 = vld [vmem:[%s185 + $0x30] sm:$0xff]
      %v2160 = vld [vmem:[%s185 + $0x38] sm:$0xff]
      %v2161 = vld [vmem:[%s185 + $0x40] sm:$0xff]
      %v2162 = vld [vmem:[%s185 + $0x48] sm:$0xff]
      %v2163 = vld [vmem:[%s185 + $0x50] sm:$0xff]
      %v2164 = vld [vmem:[%s185 + $0x58] sm:$0xff]
      %v2165 = vld [vmem:[%s185 + $0x60] sm:$0xff]
      %v2166 = vld [vmem:[%s185 + $0x68] sm:$0xff]
      %v2167 = vld [vmem:[%s185 + $0x70] sm:$0xff]
      %v2168 = vld [vmem:[%s185 + $0x78] sm:$0xff]
      %v2169 = vadd.f32 %v2137, %v2153
      %v2170 = vadd.f32 %v2138, %v2154
      %v2171 = vadd.f32 %v2139, %v2155
      %v2172 = vadd.f32 %v2140, %v2156
      %v2173 = vadd.f32 %v2141, %v2157
      %v2174 = vadd.f32 %v2142, %v2158
      %v2175 = vadd.f32 %v2143, %v2159
      %v2176 = vadd.f32 %v2144, %v2160
      %v2177 = vadd.f32 %v2145, %v2161
      %v2178 = vadd.f32 %v2146, %v2162
      %v2179 = vadd.f32 %v2147, %v2163
      %v2180 = vadd.f32 %v2148, %v2164
      %v2181 = vadd.f32 %v2149, %v2165
      %v2182 = vadd.f32 %v2150, %v2166
      %v2183 = vadd.f32 %v2151, %v2167
      %v2184 = vadd.f32 %v2152, %v2168
      %v2185 = vmax.f32 %v2169, 0.0
      %v2186 = vmax.f32 %v2170, 0.0
      %v2187 = vmax.f32 %v2171, 0.0
      %v2188 = vmax.f32 %v2172, 0.0
      %v2189 = vmax.f32 %v2173, 0.0
      %v2190 = vmax.f32 %v2174, 0.0
      %v2191 = vmax.f32 %v2175, 0.0
      %v2192 = vmax.f32 %v2176, 0.0
      %v2193 = vmax.f32 %v2177, 0.0
      %v2194 = vmax.f32 %v2178, 0.0
      %v2195 = vmax.f32 %v2179, 0.0
      %v2196 = vmax.f32 %v2180, 0.0
      %v2197 = vmax.f32 %v2181, 0.0
      %v2198 = vmax.f32 %v2182, 0.0
      %v2199 = vmax.f32 %v2183, 0.0
      %v2200 = vmax.f32 %v2184, 0.0
      %2201 = vst [vmem:[%s190] sm:$0xff] %v2185
      %2202 = vst [vmem:[%s190 + $0x8] sm:$0xff] %v2186
      %2203 = vst [vmem:[%s190 + $0x10] sm:$0xff] %v2187
      %2204 = vst [vmem:[%s190 + $0x18] sm:$0xff] %v2188
      %2205 = vst [vmem:[%s190 + $0x20] sm:$0xff] %v2189
      %2206 = vst [vmem:[%s190 + $0x28] sm:$0xff] %v2190
      %2207 = vst [vmem:[%s190 + $0x30] sm:$0xff] %v2191
      %2208 = vst [vmem:[%s190 + $0x38] sm:$0xff] %v2192
      %2209 = vst [vmem:[%s190 + $0x40] sm:$0xff] %v2193
      %2210 = vst [vmem:[%s190 + $0x48] sm:$0xff] %v2194
      %2211 = vst [vmem:[%s190 + $0x50] sm:$0xff] %v2195
      %2212 = vst [vmem:[%s190 + $0x58] sm:$0xff] %v2196
      %2213 = vst [vmem:[%s190 + $0x60] sm:$0xff] %v2197
      %2214 = vst [vmem:[%s190 + $0x68] sm:$0xff] %v2198
      %2215 = vst [vmem:[%s190 + $0x70] sm:$0xff] %v2199
      %2216 = vst [vmem:[%s190 + $0x78] sm:$0xff] %v2200
      %p2217 = scmp.lt.s32.totalorder %s14, 1
      %s2218 = scalar_select %p2217, %s14, 1
      %s2219 = smul.addr %s2218, 16
      %s2220 = smul.addr %s2219, 8
      %s2221 = scalar_lea.vmem %s3, %s2220
      // Predicated region
      $region33: #{resnet_layer_forward.3} parent=31 // pred_check
        %p2222 = pneg %p105
      $region34: #{resnet_layer_forward.3} parent=31 // pred_check_branch
        %2224 = sbr.rel (%p2222) target = $region36
      $region35: #{resnet_layer_forward.3} parent=31 // pred_region
        _
      $region36: #{resnet_layer_forward.3} parent=31 // pred_fallthru
        _
    $region32: #{resnet_layer_forward.3} parent=5 // pred_fallthru
      _
    %p2225 = scmp.le.s32.totalorder 2, %s9
    // Predicated region
    $region37: #{resnet_layer_forward.3} parent=5 // pred_check
      %p2226 = pneg %p2225
    $region38: #{resnet_layer_forward.3} parent=5 // pred_check_branch
      %2228 = sbr.rel (%p2226) target = $region40
    $region39: #{resnet_layer_forward.3} parent=5 // pred_region
      %s2229 = ssub.s32 %s9, 2
      // Predicated region
      $region41: #{resnet_layer_forward.3} parent=39 // pred_check
        %p2230 = pneg %p111
      $region42: #{resnet_layer_forward.3} parent=39 // pred_check_branch
        %2232 = sbr.rel (%p2230) target = $region44
      $region43: #{resnet_layer_forward.3} parent=39 // pred_region
        %p2233 = scmp.lt.s32.totalorder %s15, 1
        %s2234 = scalar_select %p2233, %s15, 1
        %s2235 = smul.addr %s2234, 16
        %s2236 = smul.addr %s2235, 8
        %s2237 = scalar_lea.vmem %s3, %s2236
      $region44: #{resnet_layer_forward.3} parent=39 // pred_fallthru
        _
    $region40: #{resnet_layer_forward.3} parent=5 // pred_fallthru
      _
  $region6: #{resnet_layer_forward.3} parent=0 // loop_footer
    %s13 = sadd.s32 1, %s9
  $region7: #{resnet_layer_forward.3} parent=0 // loop_footer_branch
    %8 = sbr.rel target = $region3
  $region8: #{resnet_layer_forward.3} parent=0 // loop_exit
    _

</llo_original>
